<compile_context>
chip_gen: v5e
topology: v5e:2x2
jax: 0.10.0
libtpu: 0.0.40
codegen_flags: <defaults>
</compile_context>

<pallas_src>
import functools

import jax
import jax.numpy as jnp
from jax.experimental import pallas as pl
from jax.experimental.pallas import tpu as pltpu


# ---------------------------------------------------------------------------
# Kernel: one grid step = (batch element b, encoder layer l)
# ---------------------------------------------------------------------------
def _encoder_stack_kernel(
    x_ref, emb_w_ref, emb_b_ref,
    wqkv_ref, bqkv_ref, wo_ref, bo_ref,
    g1_ref, be1_ref, w1_ref, b1_ref, w2_ref, b2_ref, g2_ref, be2_ref,
    cls_w_ref, cls_b_ref,
    logits_ref, attn_ref,
    x_scr,
    *, num_heads, eps=1e-5,
):
    l = pl.program_id(1)
    S, D = x_scr.shape
    dh = D // num_heads
    bf16 = jnp.bfloat16

    def mm(a, w):  # bf16 MXU operands, f32 accumulation
        return jnp.dot(a.astype(bf16), w.astype(bf16),
                       preferred_element_type=jnp.float32)

    # --- layer 0: input embedding into the carried activation scratch ---
    @pl.when(l == 0)
    def _():
        x_scr[...] = mm(x_ref[0], emb_w_ref[...]) + emb_b_ref[...]

    x = x_scr[...]                                   # (S, D) f32

    # --- fused QKV projection (1/sqrt(dh) pre-folded into Q columns) ---
    qkv = mm(x, wqkv_ref[0]) + bqkv_ref[0]           # (S, 3D) f32

    # TODO(synk): batch heads into one (H, S, dh) dot_general once dh >= 128;
    #             at dh=8 the per-head dots underutilize the MXU either way.
    ctx_parts = []
    p_sum = jnp.zeros((S, S), jnp.float32)
    for h in range(num_heads):
        qh = qkv[:, h * dh:(h + 1) * dh]
        kh = qkv[:, D + h * dh:D + (h + 1) * dh]
        vh = qkv[:, 2 * D + h * dh:2 * D + (h + 1) * dh]
        s = jax.lax.dot_general(
            qh.astype(bf16), kh.astype(bf16), (((1,), (1,)), ((), ())),
            preferred_element_type=jnp.float32)       # (S, S) per-batch scores
        s = s - jnp.max(s, axis=-1, keepdims=True)
        p = jnp.exp(s)                                # f32 EUP
        denom = jnp.sum(p, axis=-1, keepdims=True)
        # exact normalization for the user-facing attention map,
        # EUP approx reciprocal on the value path.
        p_sum = p_sum + p * (1.0 / denom)
        pv = p * pl.reciprocal(denom, approx=True)
        ctx_parts.append(mm(pv, vh))                  # (S, dh), stays in vregs

    ctx = jnp.concatenate(ctx_parts, axis=-1)         # (S, D), single out_proj
    attn_out = mm(ctx, wo_ref[0]) + bo_ref[0]

    # head-averaged attention map: one dense (S, S) store per (layer, batch)
    attn_ref[0, 0, :, :] = p_sum * (1.0 / num_heads)

    # --- residual + LayerNorm1 (f32 VPU path) ---
    h1 = x + attn_out
    mu1 = jnp.mean(h1, axis=-1, keepdims=True)
    var1 = jnp.mean((h1 - mu1) ** 2, axis=-1, keepdims=True)
    x = (h1 - mu1) * jax.lax.rsqrt(var1 + eps) * g1_ref[0] + be1_ref[0]

    # --- feed-forward ---
    ff = jnp.maximum(mm(x, w1_ref[0]) + b1_ref[0], 0.0)
    ff = mm(ff, w2_ref[0]) + b2_ref[0]

    # --- residual + LayerNorm2 ---
    h2 = x + ff
    mu2 = jnp.mean(h2, axis=-1, keepdims=True)
    var2 = jnp.mean((h2 - mu2) ** 2, axis=-1, keepdims=True)
    x = (h2 - mu2) * jax.lax.rsqrt(var2 + eps) * g2_ref[0] + be2_ref[0]

    x_scr[...] = x                                    # carry to next layer

    # --- classifier head on the last layer (output resident across l) ---
    @pl.when(l == pl.num_programs(1) - 1)
    def _():
        logits_ref[0, :, :] = mm(x, cls_w_ref[...]) + cls_b_ref[...]


# ---------------------------------------------------------------------------
# Wrapper: free layout work (transpose / fold scale / stack / bf16 cast)
# ---------------------------------------------------------------------------
def transformer_classifier_forward(params, x, cfg):
    B, S, Din = x.shape
    D, H, C = cfg["hidden_dim"], cfg["num_heads"], cfg["num_classes"]
    L, FF = cfg["num_layers"], cfg["ff_dim"]
    dh = D // H
    scale = 1.0 / (dh ** 0.5)
    f32, bf16 = jnp.float32, jnp.bfloat16

    emb_w = params["emb_w"].T.astype(bf16)                       # (Din, D)
    emb_b = params["emb_b"].reshape(1, D).astype(f32)
    cls_w = params["cls_w"].T.astype(bf16)                       # (D, C)
    cls_b = params["cls_b"].reshape(1, C).astype(f32)

    col_scale = jnp.concatenate(
        [jnp.full((D,), scale, f32), jnp.ones((2 * D,), f32)])

    def prep(p):
        return dict(
            wqkv=(p["wqkv"].T * col_scale[None, :]).astype(bf16),   # (D, 3D)
            bqkv=(p["bqkv"] * col_scale).reshape(1, 3 * D).astype(f32),
            wo=p["wo"].T.astype(bf16), bo=p["bo"].reshape(1, D).astype(f32),
            g1=p["g1"].reshape(1, D).astype(f32),
            be1=p["be1"].reshape(1, D).astype(f32),
            w1=p["w1"].T.astype(bf16), b1=p["bb1"].reshape(1, FF).astype(f32),
            w2=p["w2"].T.astype(bf16), b2=p["bb2"].reshape(1, D).astype(f32),
            g2=p["g2"].reshape(1, D).astype(f32),
            be2=p["be2"].reshape(1, D).astype(f32),
        )

    layers = [prep(p) for p in params["layers"]]
    stk = lambda k: jnp.stack([lp[k] for lp in layers])          # leading L dim

    operands = (
        x.astype(f32), emb_w, emb_b,
        stk("wqkv"), stk("bqkv"), stk("wo"), stk("bo"),
        stk("g1"), stk("be1"), stk("w1"), stk("b1"),
        stk("w2"), stk("b2"), stk("g2"), stk("be2"),
        cls_w, cls_b,
    )

    # per-layer weight blocks (double-buffered across the inner layer axis)
    per_layer = lambda shape: pl.BlockSpec((1,) + shape, lambda b, l: (l, 0, 0))
    shared = lambda shape: pl.BlockSpec(shape, lambda b, l: (0,) * len(shape))

    in_specs = [
        pl.BlockSpec((1, S, Din), lambda b, l: (b, 0, 0)),       # x (per batch)
        shared((Din, D)), shared((1, D)),                        # embedding
        per_layer((D, 3 * D)), per_layer((1, 3 * D)),            # fused QKV
        per_layer((D, D)), per_layer((1, D)),                    # out_proj
        per_layer((1, D)), per_layer((1, D)),                    # LayerNorm1
        per_layer((D, FF)), per_layer((1, FF)),                  # FFN linear1
        per_layer((FF, D)), per_layer((1, D)),                   # FFN linear2
        per_layer((1, D)), per_layer((1, D)),                    # LayerNorm2
        shared((D, C)), shared((1, C)),                          # classifier
    ]
    out_specs = (
        pl.BlockSpec((1, S, C), lambda b, l: (b, 0, 0)),         # logits
        pl.BlockSpec((1, 1, S, S), lambda b, l: (l, b, 0, 0)),   # attn maps
    )
    out_shape = (
        jax.ShapeDtypeStruct((B, S, C), f32),
        jax.ShapeDtypeStruct((L, B, S, S), f32),
    )

    flops = int(2 * B * S * Din * D + 2 * B * S * D * C
                + L * B * (2 * S * D * 3 * D + 4 * S * S * D
                           + 2 * S * D * D + 4 * S * D * FF))
    bytes_accessed = int(sum(op.size * op.dtype.itemsize for op in operands)
                         + B * S * C * 4 + L * B * S * S * 4)

    kern = functools.partial(_encoder_stack_kernel, num_heads=H)

    logits, attn_maps = pl.pallas_call(
        kern,
        out_shape=out_shape,
        grid_spec=pltpu.PrefetchScalarGridSpec(
            num_scalar_prefetch=0,
            grid=(B, L),
            in_specs=in_specs,
            out_specs=out_specs,
            scratch_shapes=[pltpu.VMEM((S, D), f32)],   # x carried across layers
        ),
        compiler_params=pltpu.CompilerParams(
            dimension_semantics=("parallel", "arbitrary"),
            vmem_limit_bytes=32 * 1024 * 1024),
        cost_estimate=pl.CostEstimate(
            flops=flops,
            transcendentals=int(L * B * H * S * S),
            bytes_accessed=bytes_accessed),
    )(*operands)

    return logits, attn_maps


# ---------------------------------------------------------------------------
# Parameter init (PyTorch-layout weights, consumed by ref + wrapper)
# ---------------------------------------------------------------------------
def init_params(key, cfg):
    D, F, FF, C, L = (cfg["input_dim"], cfg["hidden_dim"], cfg["ff_dim"],
                      cfg["num_classes"], cfg["num_layers"])
    keys = jax.random.split(key, 4 + 8 * L)
    n = lambda k, shape: 0.05 * jax.random.normal(k, shape, jnp.float32)
    params = {
        "emb_w": n(keys[0], (F, D)), "emb_b": n(keys[1], (F,)),
        "cls_w": n(keys[2], (C, F)), "cls_b": n(keys[3], (C,)),
        "layers": [],
    }
    for l in range(L):
        k = keys[4 + 8 * l: 4 + 8 * (l + 1)]
        params["layers"].append({
            "wqkv": n(k[0], (3 * F, F)), "bqkv": n(k[1], (3 * F,)),
            "wo":   n(k[2], (F, F)),     "bo":   n(k[3], (F,)),
            "w1":   n(k[4], (FF, F)),    "bb1":  n(k[5], (FF,)),
            "w2":   n(k[6], (F, FF)),    "bb2":  n(k[7], (F,)),
            "g1": jnp.ones((F,), jnp.float32), "be1": jnp.zeros((F,), jnp.float32),
            "g2": jnp.ones((F,), jnp.float32), "be2": jnp.zeros((F,), jnp.float32),
        })
    return params


# ---------------------------------------------------------------------------
# Pure-JAX f32 reference (PyTorch semantics) for a correctness check
# ---------------------------------------------------------------------------
def _ref_forward(params, x, cfg):
    eps = 1e-5
    H = cfg["num_heads"]

    def ln(h, g, b):
        mu = h.mean(-1, keepdims=True)
        var = ((h - mu) ** 2).mean(-1, keepdims=True)
        return (h - mu) / jnp.sqrt(var + eps) * g + b

    x = x @ params["emb_w"].T + params["emb_b"]
    B, S, D = x.shape
    dh = D // H
    maps = []
    for p in params["layers"]:
        qkv = x @ p["wqkv"].T + p["bqkv"]
        q, k, v = jnp.split(qkv, 3, axis=-1)
        q = q.reshape(B, S, H, dh).transpose(0, 2, 1, 3)
        k = k.reshape(B, S, H, dh).transpose(0, 2, 1, 3)
        v = v.reshape(B, S, H, dh).transpose(0, 2, 1, 3)
        s = jnp.einsum("bhqd,bhkd->bhqk", q, k) / jnp.sqrt(dh)
        a = jax.nn.softmax(s, axis=-1)
        maps.append(a.mean(axis=1))
        o = jnp.einsum("bhqk,bhkd->bhqd", a, v).transpose(0, 2, 1, 3).reshape(B, S, D)
        o = o @ p["wo"].T + p["bo"]
        x = ln(x + o, p["g1"], p["be1"])
        ff = jax.nn.relu(x @ p["w1"].T + p["bb1"]) @ p["w2"].T + p["bb2"]
        x = ln(x + ff, p["g2"], p["be2"])
    logits = x @ params["cls_w"].T + params["cls_b"]
    return logits, jnp.stack(maps)


# ---------------------------------------------------------------------------
if __name__ == "__main__":
    cfg = {
        "input_dim": 16,
        "hidden_dim": 32,
        "num_heads": 4,
        "num_layers": 2,
        "ff_dim": 64,
        "num_classes": 5,
        "dropout": 0.1,  # identity at inference
    }
    B, S = 2, 8

    key = jax.random.PRNGKey(0)
    kx, kp = jax.random.split(key)
    x = jax.random.normal(kx, (B, S, cfg["input_dim"]), jnp.float32)
    params = init_params(kp, cfg)

    fwd = jax.jit(lambda p, xx: transformer_classifier_forward(p, xx, cfg))
    logits, attn_maps = fwd(params, x)
    logits = jax.block_until_ready(logits)
    attn_maps = jax.block_until_ready(attn_maps)

    assert logits.shape == (B, S, cfg["num_classes"])
    assert attn_maps.shape == (cfg["num_layers"], B, S, S)

    ref_logits, ref_maps = _ref_forward(params, x, cfg)
    # logits: bf16 MXU operands + EUP approx reciprocal on the value path ->
    # loose-ish tolerance vs the pure-f32 reference.  Attention maps use exact
    # normalization so they stay tight.
    assert jnp.allclose(logits, ref_logits, atol=3e-2, rtol=3e-2)
    assert jnp.allclose(attn_maps, ref_maps, atol=5e-3, rtol=5e-3)

    print("KERNEL_OK")
</pallas_src>

<mosaic_0001>
module attributes {stable_mosaic.version = 11 : i64} {
  func.func @_encoder_stack_kernel(%arg0: i32, %arg1: i32, %arg2: memref<1x8x16xf32, #tpu.memory_space<vmem>>, %arg3: memref<16x32xbf16, #tpu.memory_space<vmem>>, %arg4: memref<1x32xf32, #tpu.memory_space<vmem>>, %arg5: memref<1x32x96xbf16, #tpu.memory_space<vmem>>, %arg6: memref<1x1x96xf32, #tpu.memory_space<vmem>>, %arg7: memref<1x32x32xbf16, #tpu.memory_space<vmem>>, %arg8: memref<1x1x32xf32, #tpu.memory_space<vmem>>, %arg9: memref<1x1x32xf32, #tpu.memory_space<vmem>>, %arg10: memref<1x1x32xf32, #tpu.memory_space<vmem>>, %arg11: memref<1x32x64xbf16, #tpu.memory_space<vmem>>, %arg12: memref<1x1x64xf32, #tpu.memory_space<vmem>>, %arg13: memref<1x64x32xbf16, #tpu.memory_space<vmem>>, %arg14: memref<1x1x32xf32, #tpu.memory_space<vmem>>, %arg15: memref<1x1x32xf32, #tpu.memory_space<vmem>>, %arg16: memref<1x1x32xf32, #tpu.memory_space<vmem>>, %arg17: memref<32x5xbf16, #tpu.memory_space<vmem>>, %arg18: memref<1x5xf32, #tpu.memory_space<vmem>>, %arg19: memref<1x8x5xf32, #tpu.memory_space<vmem>>, %arg20: memref<1x1x8x8xf32, #tpu.memory_space<vmem>>, %arg21: memref<8x32xf32, #tpu.memory_space<vmem>>) attributes {dimension_semantics = [#tpu.dimension_semantics<parallel>, #tpu.dimension_semantics<arbitrary>], iteration_bounds = array<i64: 2, 2>, scalar_prefetch = 0 : i64, scratch_operands = 1 : i64, tpu.core_type = #tpu.core_type<tc>, window_params = [{transform_indices = @transform_0, window_bounds = array<i64: 1, 8, 16>}, {pipeline_mode = #tpu.pipeline_mode<synchronous>, transform_indices = @transform_1, window_bounds = array<i64: 16, 32>}, {pipeline_mode = #tpu.pipeline_mode<synchronous>, transform_indices = @transform_2, window_bounds = array<i64: 1, 32>}, {transform_indices = @transform_3, window_bounds = array<i64: 1, 32, 96>}, {transform_indices = @transform_4, window_bounds = array<i64: 1, 1, 96>}, {transform_indices = @transform_5, window_bounds = array<i64: 1, 32, 32>}, {transform_indices = @transform_6, window_bounds = array<i64: 1, 1, 32>}, {transform_indices = @transform_7, window_bounds = array<i64: 1, 1, 32>}, {transform_indices = @transform_8, window_bounds = array<i64: 1, 1, 32>}, {transform_indices = @transform_9, window_bounds = array<i64: 1, 32, 64>}, {transform_indices = @transform_10, window_bounds = array<i64: 1, 1, 64>}, {transform_indices = @transform_11, window_bounds = array<i64: 1, 64, 32>}, {transform_indices = @transform_12, window_bounds = array<i64: 1, 1, 32>}, {transform_indices = @transform_13, window_bounds = array<i64: 1, 1, 32>}, {transform_indices = @transform_14, window_bounds = array<i64: 1, 1, 32>}, {pipeline_mode = #tpu.pipeline_mode<synchronous>, transform_indices = @transform_15, window_bounds = array<i64: 32, 5>}, {pipeline_mode = #tpu.pipeline_mode<synchronous>, transform_indices = @transform_16, window_bounds = array<i64: 1, 5>}, {transform_indices = @transform_17, window_bounds = array<i64: 1, 8, 5>}, {transform_indices = @transform_18, window_bounds = array<i64: 1, 1, 8, 8>}]} {
    %c0_i32 = arith.constant 0 : i32
    %0 = arith.cmpi eq, %arg1, %c0_i32 : i32
    %1 = arith.extui %0 : i1 to i32
    %c0_i32_0 = arith.constant 0 : i32
    %2 = arith.cmpi ne, %1, %c0_i32_0 : i32
    scf.if %2 {
      %c0_81 = arith.constant 0 : index
      %c0_82 = arith.constant 0 : index
      %c0_83 = arith.constant 0 : index
      %199 = vector.load %arg2[%c0_81, %c0_82, %c0_83] : memref<1x8x16xf32, #tpu.memory_space<vmem>>, vector<1x8x16xf32>
      %200 = vector.shape_cast %199 : vector<1x8x16xf32> to vector<8x16xf32>
      %c0_84 = arith.constant 0 : index
      %c0_85 = arith.constant 0 : index
      %201 = vector.load %arg3[%c0_84, %c0_85] : memref<16x32xbf16, #tpu.memory_space<vmem>>, vector<16x32xbf16>
      %202 = arith.truncf %200 : vector<8x16xf32> to vector<8x16xbf16>
      %cst_86 = arith.constant dense<0.000000e+00> : vector<8x32xf32>
      %203 = tpu.matmul %202, %201, %cst_86 {dimension_numbers = #tpu.dot_dimension_numbers<[1], [0], [0], [1], [0, 0, 1, 1], [], []>} : vector<8x16xbf16>, vector<16x32xbf16>, vector<8x32xf32> -> vector<8x32xf32>
      %c0_87 = arith.constant 0 : index
      %c0_88 = arith.constant 0 : index
      %204 = vector.load %arg4[%c0_87, %c0_88] : memref<1x32xf32, #tpu.memory_space<vmem>>, vector<1x32xf32>
      %205 = vector.broadcast %204 : vector<1x32xf32> to vector<8x32xf32>
      %206 = arith.addf %203, %205 : vector<8x32xf32>
      %c0_89 = arith.constant 0 : index
      %c0_90 = arith.constant 0 : index
      %207 = vector.load %arg21[%c0_89, %c0_90] : memref<8x32xf32, #tpu.memory_space<vmem>>, vector<8x32xf32>
      tpu.vector_store %arg21[%c0_89, %c0_90], %206 {strides = array<i32>} : memref<8x32xf32, #tpu.memory_space<vmem>>, vector<8x32xf32>,
    } else {
    }
    %c0 = arith.constant 0 : index
    %c0_1 = arith.constant 0 : index
    %3 = vector.load %arg21[%c0, %c0_1] : memref<8x32xf32, #tpu.memory_space<vmem>>, vector<8x32xf32>
    %c0_2 = arith.constant 0 : index
    %c0_3 = arith.constant 0 : index
    %c0_4 = arith.constant 0 : index
    %4 = vector.load %arg5[%c0_2, %c0_3, %c0_4] : memref<1x32x96xbf16, #tpu.memory_space<vmem>>, vector<1x32x96xbf16>
    %5 = vector.shape_cast %4 : vector<1x32x96xbf16> to vector<32x96xbf16>
    %6 = arith.truncf %3 : vector<8x32xf32> to vector<8x32xbf16>
    %cst = arith.constant dense<0.000000e+00> : vector<8x96xf32>
    %7 = tpu.matmul %6, %5, %cst {dimension_numbers = #tpu.dot_dimension_numbers<[1], [0], [0], [1], [0, 0, 1, 1], [], []>} : vector<8x32xbf16>, vector<32x96xbf16>, vector<8x96xf32> -> vector<8x96xf32>
    %c0_5 = arith.constant 0 : index
    %c0_6 = arith.constant 0 : index
    %c0_7 = arith.constant 0 : index
    %8 = vector.load %arg6[%c0_5, %c0_6, %c0_7] : memref<1x1x96xf32, #tpu.memory_space<vmem>>, vector<1x1x96xf32>
    %9 = vector.shape_cast %8 : vector<1x1x96xf32> to vector<1x96xf32>
    %10 = vector.broadcast %9 : vector<1x96xf32> to vector<8x96xf32>
    %11 = arith.addf %7, %10 : vector<8x96xf32>
    %cst_8 = arith.constant 0.000000e+00 : f32
    %12 = vector.broadcast %cst_8 : f32 to vector<8x8xf32>
    %13 = vector.extract_strided_slice %11 {offsets = [0, 0], sizes = [8, 8], strides = [1, 1]} : vector<8x96xf32> to vector<8x8xf32>
    %14 = vector.extract_strided_slice %11 {offsets = [0, 32], sizes = [8, 8], strides = [1, 1]} : vector<8x96xf32> to vector<8x8xf32>
    %15 = vector.extract_strided_slice %11 {offsets = [0, 64], sizes = [8, 8], strides = [1, 1]} : vector<8x96xf32> to vector<8x8xf32>
    %16 = arith.truncf %13 : vector<8x8xf32> to vector<8x8xbf16>
    %17 = arith.truncf %14 : vector<8x8xf32> to vector<8x8xbf16>
    %cst_9 = arith.constant dense<0.000000e+00> : vector<8x8xf32>
    %18 = tpu.matmul %16, %17, %cst_9 {dimension_numbers = #tpu.dot_dimension_numbers<[1], [1], [0], [0], [0, 0, 1, 0], [], []>} : vector<8x8xbf16>, vector<8x8xbf16>, vector<8x8xf32> -> vector<8x8xf32>
    %cst_10 = arith.constant dense<0xFF800000> : vector<8xf32>
    %19 = vector.multi_reduction <maximumf>, %18, %cst_10 [1] : vector<8x8xf32> to vector<8xf32>
    %20 = vector.shape_cast %19 : vector<8xf32> to vector<8x1xf32>
    %21 = vector.broadcast %20 : vector<8x1xf32> to vector<8x8xf32>
    %22 = arith.subf %18, %21 : vector<8x8xf32>
    %23 = math.exp %22 : vector<8x8xf32>
    %cst_11 = arith.constant dense<0.000000e+00> : vector<8xf32>
    %24 = vector.multi_reduction <add>, %23, %cst_11 [1] : vector<8x8xf32> to vector<8xf32>
    %25 = vector.shape_cast %24 : vector<8xf32> to vector<8x1xf32>
    %cst_12 = arith.constant 1.000000e+00 : f32
    %26 = vector.broadcast %cst_12 : f32 to vector<8x1xf32>
    %27 = arith.divf %26, %25 : vector<8x1xf32>
    %28 = vector.broadcast %27 : vector<8x1xf32> to vector<8x8xf32>
    %29 = arith.mulf %23, %28 : vector<8x8xf32>
    %30 = arith.addf %12, %29 : vector<8x8xf32>
    %31 = tpu.reciprocal %25 {approx = true} : vector<8x1xf32> -> vector<8x1xf32>
    %32 = vector.broadcast %31 : vector<8x1xf32> to vector<8x8xf32>
    %33 = arith.mulf %23, %32 : vector<8x8xf32>
    %34 = arith.truncf %33 : vector<8x8xf32> to vector<8x8xbf16>
    %35 = arith.truncf %15 : vector<8x8xf32> to vector<8x8xbf16>
    %cst_13 = arith.constant dense<0.000000e+00> : vector<8x8xf32>
    %36 = tpu.matmul %34, %35, %cst_13 {dimension_numbers = #tpu.dot_dimension_numbers<[1], [0], [0], [1], [0, 0, 1, 1], [], []>} : vector<8x8xbf16>, vector<8x8xbf16>, vector<8x8xf32> -> vector<8x8xf32>
    %37 = vector.extract_strided_slice %11 {offsets = [0, 8], sizes = [8, 8], strides = [1, 1]} : vector<8x96xf32> to vector<8x8xf32>
    %38 = vector.extract_strided_slice %11 {offsets = [0, 40], sizes = [8, 8], strides = [1, 1]} : vector<8x96xf32> to vector<8x8xf32>
    %39 = vector.extract_strided_slice %11 {offsets = [0, 72], sizes = [8, 8], strides = [1, 1]} : vector<8x96xf32> to vector<8x8xf32>
    %40 = arith.truncf %37 : vector<8x8xf32> to vector<8x8xbf16>
    %41 = arith.truncf %38 : vector<8x8xf32> to vector<8x8xbf16>
    %cst_14 = arith.constant dense<0.000000e+00> : vector<8x8xf32>
    %42 = tpu.matmul %40, %41, %cst_14 {dimension_numbers = #tpu.dot_dimension_numbers<[1], [1], [0], [0], [0, 0, 1, 0], [], []>} : vector<8x8xbf16>, vector<8x8xbf16>, vector<8x8xf32> -> vector<8x8xf32>
    %cst_15 = arith.constant dense<0xFF800000> : vector<8xf32>
    %43 = vector.multi_reduction <maximumf>, %42, %cst_15 [1] : vector<8x8xf32> to vector<8xf32>
    %44 = vector.shape_cast %43 : vector<8xf32> to vector<8x1xf32>
    %45 = vector.broadcast %44 : vector<8x1xf32> to vector<8x8xf32>
    %46 = arith.subf %42, %45 : vector<8x8xf32>
    %47 = math.exp %46 : vector<8x8xf32>
    %cst_16 = arith.constant dense<0.000000e+00> : vector<8xf32>
    %48 = vector.multi_reduction <add>, %47, %cst_16 [1] : vector<8x8xf32> to vector<8xf32>
    %49 = vector.shape_cast %48 : vector<8xf32> to vector<8x1xf32>
    %cst_17 = arith.constant 1.000000e+00 : f32
    %50 = vector.broadcast %cst_17 : f32 to vector<8x1xf32>
    %51 = arith.divf %50, %49 : vector<8x1xf32>
    %52 = vector.broadcast %51 : vector<8x1xf32> to vector<8x8xf32>
    %53 = arith.mulf %47, %52 : vector<8x8xf32>
    %54 = arith.addf %30, %53 : vector<8x8xf32>
    %55 = tpu.reciprocal %49 {approx = true} : vector<8x1xf32> -> vector<8x1xf32>
    %56 = vector.broadcast %55 : vector<8x1xf32> to vector<8x8xf32>
    %57 = arith.mulf %47, %56 : vector<8x8xf32>
    %58 = arith.truncf %57 : vector<8x8xf32> to vector<8x8xbf16>
    %59 = arith.truncf %39 : vector<8x8xf32> to vector<8x8xbf16>
    %cst_18 = arith.constant dense<0.000000e+00> : vector<8x8xf32>
    %60 = tpu.matmul %58, %59, %cst_18 {dimension_numbers = #tpu.dot_dimension_numbers<[1], [0], [0], [1], [0, 0, 1, 1], [], []>} : vector<8x8xbf16>, vector<8x8xbf16>, vector<8x8xf32> -> vector<8x8xf32>
    %61 = vector.extract_strided_slice %11 {offsets = [0, 16], sizes = [8, 8], strides = [1, 1]} : vector<8x96xf32> to vector<8x8xf32>
    %62 = vector.extract_strided_slice %11 {offsets = [0, 48], sizes = [8, 8], strides = [1, 1]} : vector<8x96xf32> to vector<8x8xf32>
    %63 = vector.extract_strided_slice %11 {offsets = [0, 80], sizes = [8, 8], strides = [1, 1]} : vector<8x96xf32> to vector<8x8xf32>
    %64 = arith.truncf %61 : vector<8x8xf32> to vector<8x8xbf16>
    %65 = arith.truncf %62 : vector<8x8xf32> to vector<8x8xbf16>
    %cst_19 = arith.constant dense<0.000000e+00> : vector<8x8xf32>
    %66 = tpu.matmul %64, %65, %cst_19 {dimension_numbers = #tpu.dot_dimension_numbers<[1], [1], [0], [0], [0, 0, 1, 0], [], []>} : vector<8x8xbf16>, vector<8x8xbf16>, vector<8x8xf32> -> vector<8x8xf32>
    %cst_20 = arith.constant dense<0xFF800000> : vector<8xf32>
    %67 = vector.multi_reduction <maximumf>, %66, %cst_20 [1] : vector<8x8xf32> to vector<8xf32>
    %68 = vector.shape_cast %67 : vector<8xf32> to vector<8x1xf32>
    %69 = vector.broadcast %68 : vector<8x1xf32> to vector<8x8xf32>
    %70 = arith.subf %66, %69 : vector<8x8xf32>
    %71 = math.exp %70 : vector<8x8xf32>
    %cst_21 = arith.constant dense<0.000000e+00> : vector<8xf32>
    %72 = vector.multi_reduction <add>, %71, %cst_21 [1] : vector<8x8xf32> to vector<8xf32>
    %73 = vector.shape_cast %72 : vector<8xf32> to vector<8x1xf32>
    %cst_22 = arith.constant 1.000000e+00 : f32
    %74 = vector.broadcast %cst_22 : f32 to vector<8x1xf32>
    %75 = arith.divf %74, %73 : vector<8x1xf32>
    %76 = vector.broadcast %75 : vector<8x1xf32> to vector<8x8xf32>
    %77 = arith.mulf %71, %76 : vector<8x8xf32>
    %78 = arith.addf %54, %77 : vector<8x8xf32>
    %79 = tpu.reciprocal %73 {approx = true} : vector<8x1xf32> -> vector<8x1xf32>
    %80 = vector.broadcast %79 : vector<8x1xf32> to vector<8x8xf32>
    %81 = arith.mulf %71, %80 : vector<8x8xf32>
    %82 = arith.truncf %81 : vector<8x8xf32> to vector<8x8xbf16>
    %83 = arith.truncf %63 : vector<8x8xf32> to vector<8x8xbf16>
    %cst_23 = arith.constant dense<0.000000e+00> : vector<8x8xf32>
    %84 = tpu.matmul %82, %83, %cst_23 {dimension_numbers = #tpu.dot_dimension_numbers<[1], [0], [0], [1], [0, 0, 1, 1], [], []>} : vector<8x8xbf16>, vector<8x8xbf16>, vector<8x8xf32> -> vector<8x8xf32>
    %85 = vector.extract_strided_slice %11 {offsets = [0, 24], sizes = [8, 8], strides = [1, 1]} : vector<8x96xf32> to vector<8x8xf32>
    %86 = vector.extract_strided_slice %11 {offsets = [0, 56], sizes = [8, 8], strides = [1, 1]} : vector<8x96xf32> to vector<8x8xf32>
    %87 = vector.extract_strided_slice %11 {offsets = [0, 88], sizes = [8, 8], strides = [1, 1]} : vector<8x96xf32> to vector<8x8xf32>
    %88 = arith.truncf %85 : vector<8x8xf32> to vector<8x8xbf16>
    %89 = arith.truncf %86 : vector<8x8xf32> to vector<8x8xbf16>
    %cst_24 = arith.constant dense<0.000000e+00> : vector<8x8xf32>
    %90 = tpu.matmul %88, %89, %cst_24 {dimension_numbers = #tpu.dot_dimension_numbers<[1], [1], [0], [0], [0, 0, 1, 0], [], []>} : vector<8x8xbf16>, vector<8x8xbf16>, vector<8x8xf32> -> vector<8x8xf32>
    %cst_25 = arith.constant dense<0xFF800000> : vector<8xf32>
    %91 = vector.multi_reduction <maximumf>, %90, %cst_25 [1] : vector<8x8xf32> to vector<8xf32>
    %92 = vector.shape_cast %91 : vector<8xf32> to vector<8x1xf32>
    %93 = vector.broadcast %92 : vector<8x1xf32> to vector<8x8xf32>
    %94 = arith.subf %90, %93 : vector<8x8xf32>
    %95 = math.exp %94 : vector<8x8xf32>
    %cst_26 = arith.constant dense<0.000000e+00> : vector<8xf32>
    %96 = vector.multi_reduction <add>, %95, %cst_26 [1] : vector<8x8xf32> to vector<8xf32>
    %97 = vector.shape_cast %96 : vector<8xf32> to vector<8x1xf32>
    %cst_27 = arith.constant 1.000000e+00 : f32
    %98 = vector.broadcast %cst_27 : f32 to vector<8x1xf32>
    %99 = arith.divf %98, %97 : vector<8x1xf32>
    %100 = vector.broadcast %99 : vector<8x1xf32> to vector<8x8xf32>
    %101 = arith.mulf %95, %100 : vector<8x8xf32>
    %102 = arith.addf %78, %101 : vector<8x8xf32>
    %103 = tpu.reciprocal %97 {approx = true} : vector<8x1xf32> -> vector<8x1xf32>
    %104 = vector.broadcast %103 : vector<8x1xf32> to vector<8x8xf32>
    %105 = arith.mulf %95, %104 : vector<8x8xf32>
    %106 = arith.truncf %105 : vector<8x8xf32> to vector<8x8xbf16>
    %107 = arith.truncf %87 : vector<8x8xf32> to vector<8x8xbf16>
    %cst_28 = arith.constant dense<0.000000e+00> : vector<8x8xf32>
    %108 = tpu.matmul %106, %107, %cst_28 {dimension_numbers = #tpu.dot_dimension_numbers<[1], [0], [0], [1], [0, 0, 1, 1], [], []>} : vector<8x8xbf16>, vector<8x8xbf16>, vector<8x8xf32> -> vector<8x8xf32>
    %109 = tpu.concatenate %36, %60, %84, %108 in 1 : vector<8x8xf32>, vector<8x8xf32>, vector<8x8xf32>, vector<8x8xf32> -> vector<8x32xf32>
    %c0_29 = arith.constant 0 : index
    %c0_30 = arith.constant 0 : index
    %c0_31 = arith.constant 0 : index
    %110 = vector.load %arg7[%c0_29, %c0_30, %c0_31] : memref<1x32x32xbf16, #tpu.memory_space<vmem>>, vector<1x32x32xbf16>
    %111 = vector.shape_cast %110 : vector<1x32x32xbf16> to vector<32x32xbf16>
    %112 = arith.truncf %109 : vector<8x32xf32> to vector<8x32xbf16>
    %cst_32 = arith.constant dense<0.000000e+00> : vector<8x32xf32>
    %113 = tpu.matmul %112, %111, %cst_32 {dimension_numbers = #tpu.dot_dimension_numbers<[1], [0], [0], [1], [0, 0, 1, 1], [], []>} : vector<8x32xbf16>, vector<32x32xbf16>, vector<8x32xf32> -> vector<8x32xf32>
    %c0_33 = arith.constant 0 : index
    %c0_34 = arith.constant 0 : index
    %c0_35 = arith.constant 0 : index
    %114 = vector.load %arg8[%c0_33, %c0_34, %c0_35] : memref<1x1x32xf32, #tpu.memory_space<vmem>>, vector<1x1x32xf32>
    %115 = vector.shape_cast %114 : vector<1x1x32xf32> to vector<1x32xf32>
    %116 = vector.broadcast %115 : vector<1x32xf32> to vector<8x32xf32>
    %117 = arith.addf %113, %116 : vector<8x32xf32>
    %cst_36 = arith.constant 2.500000e-01 : f32
    %118 = vector.broadcast %cst_36 : f32 to vector<8x8xf32>
    %119 = arith.mulf %102, %118 : vector<8x8xf32>
    %c0_37 = arith.constant 0 : index
    %c0_38 = arith.constant 0 : index
    %c0_39 = arith.constant 0 : index
    %c0_40 = arith.constant 0 : index
    %120 = vector.load %arg20[%c0_37, %c0_38, %c0_39, %c0_40] : memref<1x1x8x8xf32, #tpu.memory_space<vmem>>, vector<1x1x8x8xf32>
    %121 = vector.shape_cast %120 : vector<1x1x8x8xf32> to vector<8x8xf32>
    %122 = vector.shape_cast %119 : vector<8x8xf32> to vector<1x1x8x8xf32>
    tpu.vector_store %arg20[%c0_37, %c0_38, %c0_39, %c0_40], %122 {strides = array<i32>} : memref<1x1x8x8xf32, #tpu.memory_space<vmem>>, vector<1x1x8x8xf32>,
    %123 = arith.addf %3, %117 : vector<8x32xf32>
    %cst_41 = arith.constant dense<0.000000e+00> : vector<8xf32>
    %124 = vector.multi_reduction <add>, %123, %cst_41 [1] : vector<8x32xf32> to vector<8xf32>
    %125 = vector.shape_cast %124 : vector<8xf32> to vector<8x1xf32>
    %cst_42 = arith.constant 3.200000e+01 : f32
    %126 = vector.broadcast %cst_42 : f32 to vector<8x1xf32>
    %127 = arith.divf %125, %126 : vector<8x1xf32>
    %128 = vector.broadcast %127 : vector<8x1xf32> to vector<8x32xf32>
    %129 = arith.subf %123, %128 : vector<8x32xf32>
    %130 = arith.mulf %129, %129 : vector<8x32xf32>
    %cst_43 = arith.constant dense<0.000000e+00> : vector<8xf32>
    %131 = vector.multi_reduction <add>, %130, %cst_43 [1] : vector<8x32xf32> to vector<8xf32>
    %132 = vector.shape_cast %131 : vector<8xf32> to vector<8x1xf32>
    %cst_44 = arith.constant 3.200000e+01 : f32
    %133 = vector.broadcast %cst_44 : f32 to vector<8x1xf32>
    %134 = arith.divf %132, %133 : vector<8x1xf32>
    %135 = vector.broadcast %127 : vector<8x1xf32> to vector<8x32xf32>
    %136 = arith.subf %123, %135 : vector<8x32xf32>
    %cst_45 = arith.constant 9.99999974E-6 : f32
    %137 = vector.broadcast %cst_45 : f32 to vector<8x1xf32>
    %138 = arith.addf %134, %137 : vector<8x1xf32>
    %139 = math.rsqrt %138 : vector<8x1xf32>
    %140 = vector.broadcast %139 : vector<8x1xf32> to vector<8x32xf32>
    %141 = arith.mulf %136, %140 : vector<8x32xf32>
    %c0_46 = arith.constant 0 : index
    %c0_47 = arith.constant 0 : index
    %c0_48 = arith.constant 0 : index
    %142 = vector.load %arg9[%c0_46, %c0_47, %c0_48] : memref<1x1x32xf32, #tpu.memory_space<vmem>>, vector<1x1x32xf32>
    %143 = vector.shape_cast %142 : vector<1x1x32xf32> to vector<1x32xf32>
    %144 = vector.broadcast %143 : vector<1x32xf32> to vector<8x32xf32>
    %145 = arith.mulf %141, %144 : vector<8x32xf32>
    %c0_49 = arith.constant 0 : index
    %c0_50 = arith.constant 0 : index
    %c0_51 = arith.constant 0 : index
    %146 = vector.load %arg10[%c0_49, %c0_50, %c0_51] : memref<1x1x32xf32, #tpu.memory_space<vmem>>, vector<1x1x32xf32>
    %147 = vector.shape_cast %146 : vector<1x1x32xf32> to vector<1x32xf32>
    %148 = vector.broadcast %147 : vector<1x32xf32> to vector<8x32xf32>
    %149 = arith.addf %145, %148 : vector<8x32xf32>
    %c0_52 = arith.constant 0 : index
    %c0_53 = arith.constant 0 : index
    %c0_54 = arith.constant 0 : index
    %150 = vector.load %arg11[%c0_52, %c0_53, %c0_54] : memref<1x32x64xbf16, #tpu.memory_space<vmem>>, vector<1x32x64xbf16>
    %151 = vector.shape_cast %150 : vector<1x32x64xbf16> to vector<32x64xbf16>
    %152 = arith.truncf %149 : vector<8x32xf32> to vector<8x32xbf16>
    %cst_55 = arith.constant dense<0.000000e+00> : vector<8x64xf32>
    %153 = tpu.matmul %152, %151, %cst_55 {dimension_numbers = #tpu.dot_dimension_numbers<[1], [0], [0], [1], [0, 0, 1, 1], [], []>} : vector<8x32xbf16>, vector<32x64xbf16>, vector<8x64xf32> -> vector<8x64xf32>
    %c0_56 = arith.constant 0 : index
    %c0_57 = arith.constant 0 : index
    %c0_58 = arith.constant 0 : index
    %154 = vector.load %arg12[%c0_56, %c0_57, %c0_58] : memref<1x1x64xf32, #tpu.memory_space<vmem>>, vector<1x1x64xf32>
    %155 = vector.shape_cast %154 : vector<1x1x64xf32> to vector<1x64xf32>
    %156 = vector.broadcast %155 : vector<1x64xf32> to vector<8x64xf32>
    %157 = arith.addf %153, %156 : vector<8x64xf32>
    %cst_59 = arith.constant 0.000000e+00 : f32
    %158 = vector.broadcast %cst_59 : f32 to vector<8x64xf32>
    %159 = arith.maximumf %157, %158 : vector<8x64xf32>
    %c0_60 = arith.constant 0 : index
    %c0_61 = arith.constant 0 : index
    %c0_62 = arith.constant 0 : index
    %160 = vector.load %arg13[%c0_60, %c0_61, %c0_62] : memref<1x64x32xbf16, #tpu.memory_space<vmem>>, vector<1x64x32xbf16>
    %161 = vector.shape_cast %160 : vector<1x64x32xbf16> to vector<64x32xbf16>
    %162 = arith.truncf %159 : vector<8x64xf32> to vector<8x64xbf16>
    %cst_63 = arith.constant dense<0.000000e+00> : vector<8x32xf32>
    %163 = tpu.matmul %162, %161, %cst_63 {dimension_numbers = #tpu.dot_dimension_numbers<[1], [0], [0], [1], [0, 0, 1, 1], [], []>} : vector<8x64xbf16>, vector<64x32xbf16>, vector<8x32xf32> -> vector<8x32xf32>
    %c0_64 = arith.constant 0 : index
    %c0_65 = arith.constant 0 : index
    %c0_66 = arith.constant 0 : index
    %164 = vector.load %arg14[%c0_64, %c0_65, %c0_66] : memref<1x1x32xf32, #tpu.memory_space<vmem>>, vector<1x1x32xf32>
    %165 = vector.shape_cast %164 : vector<1x1x32xf32> to vector<1x32xf32>
    %166 = vector.broadcast %165 : vector<1x32xf32> to vector<8x32xf32>
    %167 = arith.addf %163, %166 : vector<8x32xf32>
    %168 = arith.addf %149, %167 : vector<8x32xf32>
    %cst_67 = arith.constant dense<0.000000e+00> : vector<8xf32>
    %169 = vector.multi_reduction <add>, %168, %cst_67 [1] : vector<8x32xf32> to vector<8xf32>
    %170 = vector.shape_cast %169 : vector<8xf32> to vector<8x1xf32>
    %cst_68 = arith.constant 3.200000e+01 : f32
    %171 = vector.broadcast %cst_68 : f32 to vector<8x1xf32>
    %172 = arith.divf %170, %171 : vector<8x1xf32>
    %173 = vector.broadcast %172 : vector<8x1xf32> to vector<8x32xf32>
    %174 = arith.subf %168, %173 : vector<8x32xf32>
    %175 = arith.mulf %174, %174 : vector<8x32xf32>
    %cst_69 = arith.constant dense<0.000000e+00> : vector<8xf32>
    %176 = vector.multi_reduction <add>, %175, %cst_69 [1] : vector<8x32xf32> to vector<8xf32>
    %177 = vector.shape_cast %176 : vector<8xf32> to vector<8x1xf32>
    %cst_70 = arith.constant 3.200000e+01 : f32
    %178 = vector.broadcast %cst_70 : f32 to vector<8x1xf32>
    %179 = arith.divf %177, %178 : vector<8x1xf32>
    %180 = vector.broadcast %172 : vector<8x1xf32> to vector<8x32xf32>
    %181 = arith.subf %168, %180 : vector<8x32xf32>
    %cst_71 = arith.constant 9.99999974E-6 : f32
    %182 = vector.broadcast %cst_71 : f32 to vector<8x1xf32>
    %183 = arith.addf %179, %182 : vector<8x1xf32>
    %184 = math.rsqrt %183 : vector<8x1xf32>
    %185 = vector.broadcast %184 : vector<8x1xf32> to vector<8x32xf32>
    %186 = arith.mulf %181, %185 : vector<8x32xf32>
    %c0_72 = arith.constant 0 : index
    %c0_73 = arith.constant 0 : index
    %c0_74 = arith.constant 0 : index
    %187 = vector.load %arg15[%c0_72, %c0_73, %c0_74] : memref<1x1x32xf32, #tpu.memory_space<vmem>>, vector<1x1x32xf32>
    %188 = vector.shape_cast %187 : vector<1x1x32xf32> to vector<1x32xf32>
    %189 = vector.broadcast %188 : vector<1x32xf32> to vector<8x32xf32>
    %190 = arith.mulf %186, %189 : vector<8x32xf32>
    %c0_75 = arith.constant 0 : index
    %c0_76 = arith.constant 0 : index
    %c0_77 = arith.constant 0 : index
    %191 = vector.load %arg16[%c0_75, %c0_76, %c0_77] : memref<1x1x32xf32, #tpu.memory_space<vmem>>, vector<1x1x32xf32>
    %192 = vector.shape_cast %191 : vector<1x1x32xf32> to vector<1x32xf32>
    %193 = vector.broadcast %192 : vector<1x32xf32> to vector<8x32xf32>
    %194 = arith.addf %190, %193 : vector<8x32xf32>
    %c0_78 = arith.constant 0 : index
    %c0_79 = arith.constant 0 : index
    %195 = vector.load %arg21[%c0_78, %c0_79] : memref<8x32xf32, #tpu.memory_space<vmem>>, vector<8x32xf32>
    tpu.vector_store %arg21[%c0_78, %c0_79], %194 {strides = array<i32>} : memref<8x32xf32, #tpu.memory_space<vmem>>, vector<8x32xf32>,
    %c1_i32 = arith.constant 1 : i32
    %196 = arith.cmpi eq, %arg1, %c1_i32 : i32
    %197 = arith.extui %196 : i1 to i32
    %c0_i32_80 = arith.constant 0 : i32
    %198 = arith.cmpi ne, %197, %c0_i32_80 : i32
    scf.if %198 {
      %c0_81 = arith.constant 0 : index
      %c0_82 = arith.constant 0 : index
      %199 = vector.load %arg17[%c0_81, %c0_82] : memref<32x5xbf16, #tpu.memory_space<vmem>>, vector<32x5xbf16>
      %200 = arith.truncf %194 : vector<8x32xf32> to vector<8x32xbf16>
      %cst_83 = arith.constant dense<0.000000e+00> : vector<8x5xf32>
      %201 = tpu.matmul %200, %199, %cst_83 {dimension_numbers = #tpu.dot_dimension_numbers<[1], [0], [0], [1], [0, 0, 1, 1], [], []>} : vector<8x32xbf16>, vector<32x5xbf16>, vector<8x5xf32> -> vector<8x5xf32>
      %c0_84 = arith.constant 0 : index
      %c0_85 = arith.constant 0 : index
      %202 = vector.load %arg18[%c0_84, %c0_85] : memref<1x5xf32, #tpu.memory_space<vmem>>, vector<1x5xf32>
      %203 = vector.broadcast %202 : vector<1x5xf32> to vector<8x5xf32>
      %204 = arith.addf %201, %203 : vector<8x5xf32>
      %c0_86 = arith.constant 0 : index
      %c0_87 = arith.constant 0 : index
      %c0_88 = arith.constant 0 : index
      %205 = vector.load %arg19[%c0_86, %c0_87, %c0_88] : memref<1x8x5xf32, #tpu.memory_space<vmem>>, vector<1x8x5xf32>
      %206 = vector.shape_cast %205 : vector<1x8x5xf32> to vector<8x5xf32>
      %207 = vector.shape_cast %204 : vector<8x5xf32> to vector<1x8x5xf32>
      tpu.vector_store %arg19[%c0_86, %c0_87, %c0_88], %207 {strides = array<i32>} : memref<1x8x5xf32, #tpu.memory_space<vmem>>, vector<1x8x5xf32>,
    } else {
    }
    return
  }
  func.func @transform_0(%arg0: i32, %arg1: i32) -> (i32, i32, i32) {
    %c0_i32 = arith.constant 0 : i32
    %c0_i32_0 = arith.constant 0 : i32
    %c0_i32_1 = arith.constant 0 : i32
    return %arg0, %c0_i32, %c0_i32_0 : i32, i32, i32
  }
  func.func @transform_1(%arg0: i32, %arg1: i32) -> (i32, i32) {
    %c0_i32 = arith.constant 0 : i32
    %c0_i32_0 = arith.constant 0 : i32
    %c0_i32_1 = arith.constant 0 : i32
    return %c0_i32, %c0_i32_0 : i32, i32
  }
  func.func @transform_2(%arg0: i32, %arg1: i32) -> (i32, i32) {
    %c0_i32 = arith.constant 0 : i32
    %c0_i32_0 = arith.constant 0 : i32
    %c0_i32_1 = arith.constant 0 : i32
    return %c0_i32, %c0_i32_0 : i32, i32
  }
  func.func @transform_3(%arg0: i32, %arg1: i32) -> (i32, i32, i32) {
    %c0_i32 = arith.constant 0 : i32
    %c0_i32_0 = arith.constant 0 : i32
    %c0_i32_1 = arith.constant 0 : i32
    return %arg1, %c0_i32, %c0_i32_0 : i32, i32, i32
  }
  func.func @transform_4(%arg0: i32, %arg1: i32) -> (i32, i32, i32) {
    %c0_i32 = arith.constant 0 : i32
    %c0_i32_0 = arith.constant 0 : i32
    %c0_i32_1 = arith.constant 0 : i32
    return %arg1, %c0_i32, %c0_i32_0 : i32, i32, i32
  }
  func.func @transform_5(%arg0: i32, %arg1: i32) -> (i32, i32, i32) {
    %c0_i32 = arith.constant 0 : i32
    %c0_i32_0 = arith.constant 0 : i32
    %c0_i32_1 = arith.constant 0 : i32
    return %arg1, %c0_i32, %c0_i32_0 : i32, i32, i32
  }
  func.func @transform_6(%arg0: i32, %arg1: i32) -> (i32, i32, i32) {
    %c0_i32 = arith.constant 0 : i32
    %c0_i32_0 = arith.constant 0 : i32
    %c0_i32_1 = arith.constant 0 : i32
    return %arg1, %c0_i32, %c0_i32_0 : i32, i32, i32
  }
  func.func @transform_7(%arg0: i32, %arg1: i32) -> (i32, i32, i32) {
    %c0_i32 = arith.constant 0 : i32
    %c0_i32_0 = arith.constant 0 : i32
    %c0_i32_1 = arith.constant 0 : i32
    return %arg1, %c0_i32, %c0_i32_0 : i32, i32, i32
  }
  func.func @transform_8(%arg0: i32, %arg1: i32) -> (i32, i32, i32) {
    %c0_i32 = arith.constant 0 : i32
    %c0_i32_0 = arith.constant 0 : i32
    %c0_i32_1 = arith.constant 0 : i32
    return %arg1, %c0_i32, %c0_i32_0 : i32, i32, i32
  }
  func.func @transform_9(%arg0: i32, %arg1: i32) -> (i32, i32, i32) {
    %c0_i32 = arith.constant 0 : i32
    %c0_i32_0 = arith.constant 0 : i32
    %c0_i32_1 = arith.constant 0 : i32
    return %arg1, %c0_i32, %c0_i32_0 : i32, i32, i32
  }
  func.func @transform_10(%arg0: i32, %arg1: i32) -> (i32, i32, i32) {
    %c0_i32 = arith.constant 0 : i32
    %c0_i32_0 = arith.constant 0 : i32
    %c0_i32_1 = arith.constant 0 : i32
    return %arg1, %c0_i32, %c0_i32_0 : i32, i32, i32
  }
  func.func @transform_11(%arg0: i32, %arg1: i32) -> (i32, i32, i32) {
    %c0_i32 = arith.constant 0 : i32
    %c0_i32_0 = arith.constant 0 : i32
    %c0_i32_1 = arith.constant 0 : i32
    return %arg1, %c0_i32, %c0_i32_0 : i32, i32, i32
  }
  func.func @transform_12(%arg0: i32, %arg1: i32) -> (i32, i32, i32) {
    %c0_i32 = arith.constant 0 : i32
    %c0_i32_0 = arith.constant 0 : i32
    %c0_i32_1 = arith.constant 0 : i32
    return %arg1, %c0_i32, %c0_i32_0 : i32, i32, i32
  }
  func.func @transform_13(%arg0: i32, %arg1: i32) -> (i32, i32, i32) {
    %c0_i32 = arith.constant 0 : i32
    %c0_i32_0 = arith.constant 0 : i32
    %c0_i32_1 = arith.constant 0 : i32
    return %arg1, %c0_i32, %c0_i32_0 : i32, i32, i32
  }
  func.func @transform_14(%arg0: i32, %arg1: i32) -> (i32, i32, i32) {
    %c0_i32 = arith.constant 0 : i32
    %c0_i32_0 = arith.constant 0 : i32
    %c0_i32_1 = arith.constant 0 : i32
    return %arg1, %c0_i32, %c0_i32_0 : i32, i32, i32
  }
  func.func @transform_15(%arg0: i32, %arg1: i32) -> (i32, i32) {
    %c0_i32 = arith.constant 0 : i32
    %c0_i32_0 = arith.constant 0 : i32
    %c0_i32_1 = arith.constant 0 : i32
    return %c0_i32, %c0_i32_0 : i32, i32
  }
  func.func @transform_16(%arg0: i32, %arg1: i32) -> (i32, i32) {
    %c0_i32 = arith.constant 0 : i32
    %c0_i32_0 = arith.constant 0 : i32
    %c0_i32_1 = arith.constant 0 : i32
    return %c0_i32, %c0_i32_0 : i32, i32
  }
  func.func @transform_17(%arg0: i32, %arg1: i32) -> (i32, i32, i32) {
    %c0_i32 = arith.constant 0 : i32
    %c0_i32_0 = arith.constant 0 : i32
    %c0_i32_1 = arith.constant 0 : i32
    return %arg0, %c0_i32, %c0_i32_0 : i32, i32, i32
  }
  func.func @transform_18(%arg0: i32, %arg1: i32) -> (i32, i32, i32, i32) {
    %c0_i32 = arith.constant 0 : i32
    %c0_i32_0 = arith.constant 0 : i32
    %c0_i32_1 = arith.constant 0 : i32
    return %arg1, %arg0, %c0_i32, %c0_i32_0 : i32, i32, i32, i32
  }
}

</mosaic_0001>

<llo_original>
// kernel: _lambda_.1
$region0: #{_lambda_.1}
  #allocation0 [shape = 'u32[]', space=smem, size = 0x4, offset = 0x4, fixed_abs, tag = 'smem constant byte address 0x4 - core index']
  #allocation1 [shape = 'u32[72,128]{1,0:T(1,128)}', space=vmem, size = 0x9000, scoped, tag = 'internal scratch']
  #allocation2 [shape = 'f32[8,32]{1,0:T(8,128)}', space=vmem, size = 0x1000, scoped, tag = 'scratch operand']
  %s0 = inlined_call_operand.vmem [shape: f32[2,8,16], index: 0, kind: input, shape index: {}]
  %s1 = inlined_call_operand.vmem [shape: bf16[16,32], index: 1, kind: input, shape index: {}]
  %s2 = inlined_call_operand.vmem [shape: f32[1,32], index: 2, kind: input, shape index: {}]
  %s3 = inlined_call_operand.vmem [shape: bf16[2,32,96], index: 3, kind: input, shape index: {}]
  %s4 = inlined_call_operand.vmem [shape: f32[2,1,96], index: 4, kind: input, shape index: {}]
  %s5 = inlined_call_operand.vmem [shape: bf16[2,32,32], index: 5, kind: input, shape index: {}]
  %s6 = inlined_call_operand.vmem [shape: f32[2,1,32], index: 6, kind: input, shape index: {}]
  %s7 = inlined_call_operand.vmem [shape: f32[2,1,32], index: 7, kind: input, shape index: {}]
  %s8 = inlined_call_operand.vmem [shape: f32[2,1,32], index: 8, kind: input, shape index: {}]
  %s9 = inlined_call_operand.vmem [shape: bf16[2,32,64], index: 9, kind: input, shape index: {}]
  %s10 = inlined_call_operand.vmem [shape: f32[2,1,64], index: 10, kind: input, shape index: {}]
  %s11 = inlined_call_operand.vmem [shape: bf16[2,64,32], index: 11, kind: input, shape index: {}]
  %s12 = inlined_call_operand.vmem [shape: f32[2,1,32], index: 12, kind: input, shape index: {}]
  %s13 = inlined_call_operand.vmem [shape: f32[2,1,32], index: 13, kind: input, shape index: {}]
  %s14 = inlined_call_operand.vmem [shape: f32[2,1,32], index: 14, kind: input, shape index: {}]
  %s15 = inlined_call_operand.vmem [shape: bf16[32,5], index: 15, kind: input, shape index: {}]
  %s16 = inlined_call_operand.vmem [shape: f32[1,5], index: 16, kind: input, shape index: {}]
  %s17 = inlined_call_operand.vmem [shape: f32[2,8,5], index: 17, kind: output, shape index: {0}]
  %s18 = inlined_call_operand.hbm [shape: f32[2,2,8,8], index: 18, kind: output, shape index: {1}]
  %19 = xla_tuple %s17, %s18
  %s20 = sld [smem:[#allocation0]]
  $region117: #{_lambda_.1} parent=0
    _
  %s22 = ssub.s32 1, %s20
  %s23 = scalar_select 0, %s22, %s20
  $region1: #{_lambda_.1} parent=0
    #allocation3 [shape = 'u8[8192]{0}', space=vmem, size = 0x2000, scoped, tag = 'output window, operand 1']
    #allocation4 [shape = 's32[2]{0}', space=sflag, size = 0x8, scoped, tag = 'scoped memory for _lambda_.1']
    %24 = vsyncpa [#allocation4], 0
    %s25 = scalar_lea.sflag [#allocation4], 1
    %26 = vsyncpa %s25, 0
    loop: start=0, step=1, limit=6
    $region2: #{_lambda_.1} parent=1 // loop_pre_header
      _
    $region3: #{_lambda_.1} parent=1 // loop_header
      %s28 = sphi 0, %s32
      %p29 = scmp.ge.s32.totalorder %s28, 6
      %s35 = sphi 0, %s47
      %s36 = sphi 0, %s43
      %s37 = sphi 0, %s35
      %s38 = sphi 0, %s36
      %s39 = sphi 0, %s37
      %s40 = sphi 0, %s38
      %s50 = sphi 0, %s52
      %s53 = sphi 0, %s50
      %s54 = sphi 0, %s53
      %s70 = sphi 0, %s54
      %s74 = sphi 0, %s74
      %s76 = sphi 0, %s74
      %s77 = sphi 0, %s76
      %s91 = sphi 0, %s77
      %s95 = sphi 0, %s95
      %s97 = sphi 0, %s95
      %s98 = sphi 0, %s97
      %s112 = sphi 0, %s98
      %s118 = sphi 0, %s120
      %s121 = sphi 0, %s118
      %s122 = sphi 0, %s121
      %s138 = sphi 0, %s122
      %s144 = sphi 0, %s146
      %s147 = sphi 0, %s144
      %s148 = sphi 0, %s147
      %s164 = sphi 0, %s148
      %s170 = sphi 0, %s172
      %s173 = sphi 0, %s170
      %s174 = sphi 0, %s173
      %s190 = sphi 0, %s174
      %s196 = sphi 0, %s198
      %s199 = sphi 0, %s196
      %s200 = sphi 0, %s199
      %s216 = sphi 0, %s200
      %s222 = sphi 0, %s224
      %s225 = sphi 0, %s222
      %s226 = sphi 0, %s225
      %s242 = sphi 0, %s226
      %s248 = sphi 0, %s250
      %s251 = sphi 0, %s248
      %s252 = sphi 0, %s251
      %s268 = sphi 0, %s252
      %s274 = sphi 0, %s276
      %s277 = sphi 0, %s274
      %s278 = sphi 0, %s277
      %s294 = sphi 0, %s278
      %s300 = sphi 0, %s302
      %s303 = sphi 0, %s300
      %s304 = sphi 0, %s303
      %s320 = sphi 0, %s304
      %s326 = sphi 0, %s328
      %s329 = sphi 0, %s326
      %s330 = sphi 0, %s329
      %s346 = sphi 0, %s330
      %s352 = sphi 0, %s354
      %s355 = sphi 0, %s352
      %s356 = sphi 0, %s355
      %s372 = sphi 0, %s356
      %s378 = sphi 0, %s380
      %s381 = sphi 0, %s378
      %s382 = sphi 0, %s381
      %s398 = sphi 0, %s382
      %s404 = sphi 0, %s406
      %s407 = sphi 0, %s404
      %s408 = sphi 0, %s407
      %s424 = sphi 0, %s408
      %s428 = sphi 0, %s428
      %s430 = sphi 0, %s428
      %s431 = sphi 0, %s430
      %s445 = sphi 0, %s431
      %s449 = sphi 0, %s449
      %s451 = sphi 0, %s449
      %s452 = sphi 0, %s451
      %s466 = sphi 0, %s452
      %s472 = sphi 0, %s474
      %s475 = sphi 0, %s472
      %s476 = sphi 0, %s475
      %s492 = sphi 0, %s476
      %s500 = sphi 0, %s502
      %s503 = sphi 0, %s500
      %s504 = sphi 0, %s503
      %s520 = sphi 0, %s504
    $region4: #{_lambda_.1} parent=1 // loop_header_branch
      %31 = sbr.rel (%p29) target = $region8
    $region5: #{_lambda_.1} parent=1 // loop_body
      %s33 = ssub.s32 %s28, 1
      %s34 = ssub.s32 %s28, 2
      %s41 = sadd.s32 1, %s36
      %p42 = scmp.ge.s32.totalorder %s41, 2
      %s43 = scalar_select %p42, 0, %s41
      %s44 = sadd.s32 1, %s35
      %s45 = scalar_select %p42, %s44, %s35
      %p46 = scmp.ge.s32.totalorder %s45, 2
      %s47 = scalar_select %p46, 0, %s45
      %s48 = ssub.s32 %s35, %s47
      %p49 = scmp.eq.s32.totalorder %s48, 0
      %s51 = sadd.s32 %s50, 1
      %s52 = scalar_select %p49, %s50, %s51
      %p55 = pneg %p49
      %p56 = scmp.eq.s32.totalorder %s28, 3
      %p57 = por %p55, %p56
      %p58 = scmp.ne.s32.totalorder %s50, %s53
      %p59 = scmp.eq.s32.totalorder %s28, 0
      %p60 = por %p58, %p59
      %p61 = scmp.ne.s32.totalorder %s50, %s53
      %p62 = scmp.eq.s32.totalorder %s33, 3
      %p63 = por %p61, %p62
      %p64 = scmp.ne.s32.totalorder %s53, %s54
      %p65 = scmp.eq.s32.totalorder %s33, 0
      %p66 = por %p64, %p65
      %p67 = scmp.ne.s32.totalorder %s53, %s54
      %p68 = scmp.eq.s32.totalorder %s34, 3
      %p69 = por %p67, %p68
      %p71 = scmp.ne.s32.totalorder %s54, %s70
      %p72 = scmp.eq.s32.totalorder %s34, 0
      %p73 = por %p71, %p72
      %s75 = sadd.s32 %s74, 1
      %p78 = scmp.eq.s32.totalorder %s28, 3
      %p79 = scmp.ne.s32.totalorder %s74, %s76
      %p80 = scmp.eq.s32.totalorder %s28, 0
      %p81 = por %p79, %p80
      %p82 = scmp.ne.s32.totalorder %s74, %s76
      %p83 = scmp.eq.s32.totalorder %s33, 3
      %p84 = por %p82, %p83
      %p85 = scmp.ne.s32.totalorder %s76, %s77
      %p86 = scmp.eq.s32.totalorder %s33, 0
      %p87 = por %p85, %p86
      %p88 = scmp.ne.s32.totalorder %s76, %s77
      %p89 = scmp.eq.s32.totalorder %s34, 3
      %p90 = por %p88, %p89
      %p92 = scmp.ne.s32.totalorder %s77, %s91
      %p93 = scmp.eq.s32.totalorder %s34, 0
      %p94 = por %p92, %p93
      %s96 = sadd.s32 %s95, 1
      %p99 = scmp.eq.s32.totalorder %s28, 3
      %p100 = scmp.ne.s32.totalorder %s95, %s97
      %p101 = scmp.eq.s32.totalorder %s28, 0
      %p102 = por %p100, %p101
      %p103 = scmp.ne.s32.totalorder %s95, %s97
      %p104 = scmp.eq.s32.totalorder %s33, 3
      %p105 = por %p103, %p104
      %p106 = scmp.ne.s32.totalorder %s97, %s98
      %p107 = scmp.eq.s32.totalorder %s33, 0
      %p108 = por %p106, %p107
      %p109 = scmp.ne.s32.totalorder %s97, %s98
      %p110 = scmp.eq.s32.totalorder %s34, 3
      %p111 = por %p109, %p110
      %p113 = scmp.ne.s32.totalorder %s98, %s112
      %p114 = scmp.eq.s32.totalorder %s34, 0
      %p115 = por %p113, %p114
      %s116 = ssub.s32 %s36, %s43
      %p117 = scmp.eq.s32.totalorder %s116, 0
      %s119 = sadd.s32 %s118, 1
      %s120 = scalar_select %p117, %s118, %s119
      %p123 = pneg %p117
      %p124 = scmp.eq.s32.totalorder %s28, 3
      %p125 = por %p123, %p124
      %p126 = scmp.ne.s32.totalorder %s118, %s121
      %p127 = scmp.eq.s32.totalorder %s28, 0
      %p128 = por %p126, %p127
      %p129 = scmp.ne.s32.totalorder %s118, %s121
      %p130 = scmp.eq.s32.totalorder %s33, 3
      %p131 = por %p129, %p130
      %p132 = scmp.ne.s32.totalorder %s121, %s122
      %p133 = scmp.eq.s32.totalorder %s33, 0
      %p134 = por %p132, %p133
      %p135 = scmp.ne.s32.totalorder %s121, %s122
      %p136 = scmp.eq.s32.totalorder %s34, 3
      %p137 = por %p135, %p136
      %p139 = scmp.ne.s32.totalorder %s122, %s138
      %p140 = scmp.eq.s32.totalorder %s34, 0
      %p141 = por %p139, %p140
      %s142 = ssub.s32 %s36, %s43
      %p143 = scmp.eq.s32.totalorder %s142, 0
      %s145 = sadd.s32 %s144, 1
      %s146 = scalar_select %p143, %s144, %s145
      %p149 = pneg %p143
      %p150 = scmp.eq.s32.totalorder %s28, 3
      %p151 = por %p149, %p150
      %p152 = scmp.ne.s32.totalorder %s144, %s147
      %p153 = scmp.eq.s32.totalorder %s28, 0
      %p154 = por %p152, %p153
      %p155 = scmp.ne.s32.totalorder %s144, %s147
      %p156 = scmp.eq.s32.totalorder %s33, 3
      %p157 = por %p155, %p156
      %p158 = scmp.ne.s32.totalorder %s147, %s148
      %p159 = scmp.eq.s32.totalorder %s33, 0
      %p160 = por %p158, %p159
      %p161 = scmp.ne.s32.totalorder %s147, %s148
      %p162 = scmp.eq.s32.totalorder %s34, 3
      %p163 = por %p161, %p162
      %p165 = scmp.ne.s32.totalorder %s148, %s164
      %p166 = scmp.eq.s32.totalorder %s34, 0
      %p167 = por %p165, %p166
      %s168 = ssub.s32 %s36, %s43
      %p169 = scmp.eq.s32.totalorder %s168, 0
      %s171 = sadd.s32 %s170, 1
      %s172 = scalar_select %p169, %s170, %s171
      %p175 = pneg %p169
      %p176 = scmp.eq.s32.totalorder %s28, 3
      %p177 = por %p175, %p176
      %p178 = scmp.ne.s32.totalorder %s170, %s173
      %p179 = scmp.eq.s32.totalorder %s28, 0
      %p180 = por %p178, %p179
      %p181 = scmp.ne.s32.totalorder %s170, %s173
      %p182 = scmp.eq.s32.totalorder %s33, 3
      %p183 = por %p181, %p182
      %p184 = scmp.ne.s32.totalorder %s173, %s174
      %p185 = scmp.eq.s32.totalorder %s33, 0
      %p186 = por %p184, %p185
      %p187 = scmp.ne.s32.totalorder %s173, %s174
      %p188 = scmp.eq.s32.totalorder %s34, 3
      %p189 = por %p187, %p188
      %p191 = scmp.ne.s32.totalorder %s174, %s190
      %p192 = scmp.eq.s32.totalorder %s34, 0
      %p193 = por %p191, %p192
      %s194 = ssub.s32 %s36, %s43
      %p195 = scmp.eq.s32.totalorder %s194, 0
      %s197 = sadd.s32 %s196, 1
      %s198 = scalar_select %p195, %s196, %s197
      %p201 = pneg %p195
      %p202 = scmp.eq.s32.totalorder %s28, 3
      %p203 = por %p201, %p202
      %p204 = scmp.ne.s32.totalorder %s196, %s199
      %p205 = scmp.eq.s32.totalorder %s28, 0
      %p206 = por %p204, %p205
      %p207 = scmp.ne.s32.totalorder %s196, %s199
      %p208 = scmp.eq.s32.totalorder %s33, 3
      %p209 = por %p207, %p208
      %p210 = scmp.ne.s32.totalorder %s199, %s200
      %p211 = scmp.eq.s32.totalorder %s33, 0
      %p212 = por %p210, %p211
      %p213 = scmp.ne.s32.totalorder %s199, %s200
      %p214 = scmp.eq.s32.totalorder %s34, 3
      %p215 = por %p213, %p214
      %p217 = scmp.ne.s32.totalorder %s200, %s216
      %p218 = scmp.eq.s32.totalorder %s34, 0
      %p219 = por %p217, %p218
      %s220 = ssub.s32 %s36, %s43
      %p221 = scmp.eq.s32.totalorder %s220, 0
      %s223 = sadd.s32 %s222, 1
      %s224 = scalar_select %p221, %s222, %s223
      %p227 = pneg %p221
      %p228 = scmp.eq.s32.totalorder %s28, 3
      %p229 = por %p227, %p228
      %p230 = scmp.ne.s32.totalorder %s222, %s225
      %p231 = scmp.eq.s32.totalorder %s28, 0
      %p232 = por %p230, %p231
      %p233 = scmp.ne.s32.totalorder %s222, %s225
      %p234 = scmp.eq.s32.totalorder %s33, 3
      %p235 = por %p233, %p234
      %p236 = scmp.ne.s32.totalorder %s225, %s226
      %p237 = scmp.eq.s32.totalorder %s33, 0
      %p238 = por %p236, %p237
      %p239 = scmp.ne.s32.totalorder %s225, %s226
      %p240 = scmp.eq.s32.totalorder %s34, 3
      %p241 = por %p239, %p240
      %p243 = scmp.ne.s32.totalorder %s226, %s242
      %p244 = scmp.eq.s32.totalorder %s34, 0
      %p245 = por %p243, %p244
      %s246 = ssub.s32 %s36, %s43
      %p247 = scmp.eq.s32.totalorder %s246, 0
      %s249 = sadd.s32 %s248, 1
      %s250 = scalar_select %p247, %s248, %s249
      %p253 = pneg %p247
      %p254 = scmp.eq.s32.totalorder %s28, 3
      %p255 = por %p253, %p254
      %p256 = scmp.ne.s32.totalorder %s248, %s251
      %p257 = scmp.eq.s32.totalorder %s28, 0
      %p258 = por %p256, %p257
      %p259 = scmp.ne.s32.totalorder %s248, %s251
      %p260 = scmp.eq.s32.totalorder %s33, 3
      %p261 = por %p259, %p260
      %p262 = scmp.ne.s32.totalorder %s251, %s252
      %p263 = scmp.eq.s32.totalorder %s33, 0
      %p264 = por %p262, %p263
      %p265 = scmp.ne.s32.totalorder %s251, %s252
      %p266 = scmp.eq.s32.totalorder %s34, 3
      %p267 = por %p265, %p266
      %p269 = scmp.ne.s32.totalorder %s252, %s268
      %p270 = scmp.eq.s32.totalorder %s34, 0
      %p271 = por %p269, %p270
      %s272 = ssub.s32 %s36, %s43
      %p273 = scmp.eq.s32.totalorder %s272, 0
      %s275 = sadd.s32 %s274, 1
      %s276 = scalar_select %p273, %s274, %s275
      %p279 = pneg %p273
      %p280 = scmp.eq.s32.totalorder %s28, 3
      %p281 = por %p279, %p280
      %p282 = scmp.ne.s32.totalorder %s274, %s277
      %p283 = scmp.eq.s32.totalorder %s28, 0
      %p284 = por %p282, %p283
      %p285 = scmp.ne.s32.totalorder %s274, %s277
      %p286 = scmp.eq.s32.totalorder %s33, 3
      %p287 = por %p285, %p286
      %p288 = scmp.ne.s32.totalorder %s277, %s278
      %p289 = scmp.eq.s32.totalorder %s33, 0
      %p290 = por %p288, %p289
      %p291 = scmp.ne.s32.totalorder %s277, %s278
      %p292 = scmp.eq.s32.totalorder %s34, 3
      %p293 = por %p291, %p292
      %p295 = scmp.ne.s32.totalorder %s278, %s294
      %p296 = scmp.eq.s32.totalorder %s34, 0
      %p297 = por %p295, %p296
      %s298 = ssub.s32 %s36, %s43
      %p299 = scmp.eq.s32.totalorder %s298, 0
      %s301 = sadd.s32 %s300, 1
      %s302 = scalar_select %p299, %s300, %s301
      %p305 = pneg %p299
      %p306 = scmp.eq.s32.totalorder %s28, 3
      %p307 = por %p305, %p306
      %p308 = scmp.ne.s32.totalorder %s300, %s303
      %p309 = scmp.eq.s32.totalorder %s28, 0
      %p310 = por %p308, %p309
      %p311 = scmp.ne.s32.totalorder %s300, %s303
      %p312 = scmp.eq.s32.totalorder %s33, 3
      %p313 = por %p311, %p312
      %p314 = scmp.ne.s32.totalorder %s303, %s304
      %p315 = scmp.eq.s32.totalorder %s33, 0
      %p316 = por %p314, %p315
      %p317 = scmp.ne.s32.totalorder %s303, %s304
      %p318 = scmp.eq.s32.totalorder %s34, 3
      %p319 = por %p317, %p318
      %p321 = scmp.ne.s32.totalorder %s304, %s320
      %p322 = scmp.eq.s32.totalorder %s34, 0
      %p323 = por %p321, %p322
      %s324 = ssub.s32 %s36, %s43
      %p325 = scmp.eq.s32.totalorder %s324, 0
      %s327 = sadd.s32 %s326, 1
      %s328 = scalar_select %p325, %s326, %s327
      %p331 = pneg %p325
      %p332 = scmp.eq.s32.totalorder %s28, 3
      %p333 = por %p331, %p332
      %p334 = scmp.ne.s32.totalorder %s326, %s329
      %p335 = scmp.eq.s32.totalorder %s28, 0
      %p336 = por %p334, %p335
      %p337 = scmp.ne.s32.totalorder %s326, %s329
      %p338 = scmp.eq.s32.totalorder %s33, 3
      %p339 = por %p337, %p338
      %p340 = scmp.ne.s32.totalorder %s329, %s330
      %p341 = scmp.eq.s32.totalorder %s33, 0
      %p342 = por %p340, %p341
      %p343 = scmp.ne.s32.totalorder %s329, %s330
      %p344 = scmp.eq.s32.totalorder %s34, 3
      %p345 = por %p343, %p344
      %p347 = scmp.ne.s32.totalorder %s330, %s346
      %p348 = scmp.eq.s32.totalorder %s34, 0
      %p349 = por %p347, %p348
      %s350 = ssub.s32 %s36, %s43
      %p351 = scmp.eq.s32.totalorder %s350, 0
      %s353 = sadd.s32 %s352, 1
      %s354 = scalar_select %p351, %s352, %s353
      %p357 = pneg %p351
      %p358 = scmp.eq.s32.totalorder %s28, 3
      %p359 = por %p357, %p358
      %p360 = scmp.ne.s32.totalorder %s352, %s355
      %p361 = scmp.eq.s32.totalorder %s28, 0
      %p362 = por %p360, %p361
      %p363 = scmp.ne.s32.totalorder %s352, %s355
      %p364 = scmp.eq.s32.totalorder %s33, 3
      %p365 = por %p363, %p364
      %p366 = scmp.ne.s32.totalorder %s355, %s356
      %p367 = scmp.eq.s32.totalorder %s33, 0
      %p368 = por %p366, %p367
      %p369 = scmp.ne.s32.totalorder %s355, %s356
      %p370 = scmp.eq.s32.totalorder %s34, 3
      %p371 = por %p369, %p370
      %p373 = scmp.ne.s32.totalorder %s356, %s372
      %p374 = scmp.eq.s32.totalorder %s34, 0
      %p375 = por %p373, %p374
      %s376 = ssub.s32 %s36, %s43
      %p377 = scmp.eq.s32.totalorder %s376, 0
      %s379 = sadd.s32 %s378, 1
      %s380 = scalar_select %p377, %s378, %s379
      %p383 = pneg %p377
      %p384 = scmp.eq.s32.totalorder %s28, 3
      %p385 = por %p383, %p384
      %p386 = scmp.ne.s32.totalorder %s378, %s381
      %p387 = scmp.eq.s32.totalorder %s28, 0
      %p388 = por %p386, %p387
      %p389 = scmp.ne.s32.totalorder %s378, %s381
      %p390 = scmp.eq.s32.totalorder %s33, 3
      %p391 = por %p389, %p390
      %p392 = scmp.ne.s32.totalorder %s381, %s382
      %p393 = scmp.eq.s32.totalorder %s33, 0
      %p394 = por %p392, %p393
      %p395 = scmp.ne.s32.totalorder %s381, %s382
      %p396 = scmp.eq.s32.totalorder %s34, 3
      %p397 = por %p395, %p396
      %p399 = scmp.ne.s32.totalorder %s382, %s398
      %p400 = scmp.eq.s32.totalorder %s34, 0
      %p401 = por %p399, %p400
      %s402 = ssub.s32 %s36, %s43
      %p403 = scmp.eq.s32.totalorder %s402, 0
      %s405 = sadd.s32 %s404, 1
      %s406 = scalar_select %p403, %s404, %s405
      %p409 = pneg %p403
      %p410 = scmp.eq.s32.totalorder %s28, 3
      %p411 = por %p409, %p410
      %p412 = scmp.ne.s32.totalorder %s404, %s407
      %p413 = scmp.eq.s32.totalorder %s28, 0
      %p414 = por %p412, %p413
      %p415 = scmp.ne.s32.totalorder %s404, %s407
      %p416 = scmp.eq.s32.totalorder %s33, 3
      %p417 = por %p415, %p416
      %p418 = scmp.ne.s32.totalorder %s407, %s408
      %p419 = scmp.eq.s32.totalorder %s33, 0
      %p420 = por %p418, %p419
      %p421 = scmp.ne.s32.totalorder %s407, %s408
      %p422 = scmp.eq.s32.totalorder %s34, 3
      %p423 = por %p421, %p422
      %p425 = scmp.ne.s32.totalorder %s408, %s424
      %p426 = scmp.eq.s32.totalorder %s34, 0
      %p427 = por %p425, %p426
      %s429 = sadd.s32 %s428, 1
      %p432 = scmp.eq.s32.totalorder %s28, 3
      %p433 = scmp.ne.s32.totalorder %s428, %s430
      %p434 = scmp.eq.s32.totalorder %s28, 0
      %p435 = por %p433, %p434
      %p436 = scmp.ne.s32.totalorder %s428, %s430
      %p437 = scmp.eq.s32.totalorder %s33, 3
      %p438 = por %p436, %p437
      %p439 = scmp.ne.s32.totalorder %s430, %s431
      %p440 = scmp.eq.s32.totalorder %s33, 0
      %p441 = por %p439, %p440
      %p442 = scmp.ne.s32.totalorder %s430, %s431
      %p443 = scmp.eq.s32.totalorder %s34, 3
      %p444 = por %p442, %p443
      %p446 = scmp.ne.s32.totalorder %s431, %s445
      %p447 = scmp.eq.s32.totalorder %s34, 0
      %p448 = por %p446, %p447
      %s450 = sadd.s32 %s449, 1
      %p453 = scmp.eq.s32.totalorder %s28, 3
      %p454 = scmp.ne.s32.totalorder %s449, %s451
      %p455 = scmp.eq.s32.totalorder %s28, 0
      %p456 = por %p454, %p455
      %p457 = scmp.ne.s32.totalorder %s449, %s451
      %p458 = scmp.eq.s32.totalorder %s33, 3
      %p459 = por %p457, %p458
      %p460 = scmp.ne.s32.totalorder %s451, %s452
      %p461 = scmp.eq.s32.totalorder %s33, 0
      %p462 = por %p460, %p461
      %p463 = scmp.ne.s32.totalorder %s451, %s452
      %p464 = scmp.eq.s32.totalorder %s34, 3
      %p465 = por %p463, %p464
      %p467 = scmp.ne.s32.totalorder %s452, %s466
      %p468 = scmp.eq.s32.totalorder %s34, 0
      %p469 = por %p467, %p468
      %s470 = ssub.s32 %s35, %s47
      %p471 = scmp.eq.s32.totalorder %s470, 0
      %s473 = sadd.s32 %s472, 1
      %s474 = scalar_select %p471, %s472, %s473
      %p477 = pneg %p471
      %p478 = scmp.eq.s32.totalorder %s28, 3
      %p479 = por %p477, %p478
      %p480 = scmp.ne.s32.totalorder %s472, %s475
      %p481 = scmp.eq.s32.totalorder %s28, 0
      %p482 = por %p480, %p481
      %p483 = scmp.ne.s32.totalorder %s472, %s475
      %p484 = scmp.eq.s32.totalorder %s33, 3
      %p485 = por %p483, %p484
      %p486 = scmp.ne.s32.totalorder %s475, %s476
      %p487 = scmp.eq.s32.totalorder %s33, 0
      %p488 = por %p486, %p487
      %p489 = scmp.ne.s32.totalorder %s475, %s476
      %p490 = scmp.eq.s32.totalorder %s34, 3
      %p491 = por %p489, %p490
      %p493 = scmp.ne.s32.totalorder %s476, %s492
      %p494 = scmp.eq.s32.totalorder %s34, 0
      %p495 = por %p493, %p494
      %s496 = ssub.s32 %s36, %s43
      %s497 = ssub.s32 %s35, %s47
      %s498 = sor.u32 %s496, %s497
      %p499 = scmp.eq.s32.totalorder %s498, 0
      %s501 = sadd.s32 %s500, 1
      %s502 = scalar_select %p499, %s500, %s501
      %p505 = pneg %p499
      %p506 = scmp.eq.s32.totalorder %s28, 3
      %p507 = por %p505, %p506
      %p508 = scmp.ne.s32.totalorder %s500, %s503
      %p509 = scmp.eq.s32.totalorder %s28, 0
      %p510 = por %p508, %p509
      %p511 = scmp.ne.s32.totalorder %s500, %s503
      %p512 = scmp.eq.s32.totalorder %s33, 3
      %p513 = por %p511, %p512
      %p514 = scmp.ne.s32.totalorder %s503, %s504
      %p515 = scmp.eq.s32.totalorder %s33, 0
      %p516 = por %p514, %p515
      %p517 = scmp.ne.s32.totalorder %s503, %s504
      %p518 = scmp.eq.s32.totalorder %s34, 3
      %p519 = por %p517, %p518
      %p521 = scmp.ne.s32.totalorder %s504, %s520
      %p522 = scmp.eq.s32.totalorder %s34, 0
      %p523 = por %p521, %p522
      %p524 = scmp.le.s32.totalorder 1, %s28
      %p525 = scmp.lt.s32.totalorder %s28, 5
      %p526 = pnand %p524, %p525
      %p527 = pneg %p526
      // Predicated region
      $region9: #{_lambda_.1} parent=5 // pred_check
        _
      $region10: #{_lambda_.1} parent=5 // pred_check_branch
        %529 = sbr.rel (%p526) target = $region12
      $region11: #{_lambda_.1} parent=5 // pred_region
        %s530 = ssub.s32 %s28, 1
        // Predicated region
        $region13: #{_lambda_.1} parent=11 // pred_check
          %p531 = pneg %p87
        $region14: #{_lambda_.1} parent=11 // pred_check_branch
          %533 = sbr.rel (%p531) target = $region16
        $region15: #{_lambda_.1} parent=11 // pred_region
          _
        $region16: #{_lambda_.1} parent=11 // pred_fallthru
          _
        // Predicated region
        $region17: #{_lambda_.1} parent=11 // pred_check
          %p534 = pneg %p108
        $region18: #{_lambda_.1} parent=11 // pred_check_branch
          %536 = sbr.rel (%p534) target = $region20
        $region19: #{_lambda_.1} parent=11 // pred_region
          _
        $region20: #{_lambda_.1} parent=11 // pred_fallthru
          _
        // Predicated region
        $region21: #{_lambda_.1} parent=11 // pred_check
          %p537 = pneg %p441
        $region22: #{_lambda_.1} parent=11 // pred_check_branch
          %539 = sbr.rel (%p537) target = $region24
        $region23: #{_lambda_.1} parent=11 // pred_region
          _
        $region24: #{_lambda_.1} parent=11 // pred_fallthru
          _
        // Predicated region
        $region25: #{_lambda_.1} parent=11 // pred_check
          %p540 = pneg %p462
        $region26: #{_lambda_.1} parent=11 // pred_check_branch
          %542 = sbr.rel (%p540) target = $region28
        $region27: #{_lambda_.1} parent=11 // pred_region
          _
        $region28: #{_lambda_.1} parent=11 // pred_fallthru
          _
      $region12: #{_lambda_.1} parent=5 // pred_fallthru
        _
      %p543 = scmp.lt.s32.totalorder %s28, 4
      // Predicated region
      $region29: #{_lambda_.1} parent=5 // pred_check
        %p544 = pneg %p543
      $region30: #{_lambda_.1} parent=5 // pred_check_branch
        %546 = sbr.rel (%p544) target = $region32
      $region31: #{_lambda_.1} parent=5 // pred_region
        // Predicated region
        $region33: #{_lambda_.1} parent=31 // pred_check
          %p547 = pneg %p60
        $region34: #{_lambda_.1} parent=31 // pred_check_branch
          %549 = sbr.rel (%p547) target = $region36
        $region35: #{_lambda_.1} parent=31 // pred_region
          %p550 = scmp.lt.s32.totalorder %s35, 1
          %s551 = scalar_select %p550, %s35, 1
          %s552 = smul.addr %s551, 8
          %s553 = scalar_lea.vmem %s0, %s552
        $region36: #{_lambda_.1} parent=31 // pred_fallthru
          _
        // Predicated region
        $region37: #{_lambda_.1} parent=31 // pred_check
          %p554 = pneg %p128
        $region38: #{_lambda_.1} parent=31 // pred_check_branch
          %556 = sbr.rel (%p554) target = $region40
        $region39: #{_lambda_.1} parent=31 // pred_region
          %p557 = scmp.lt.s32.totalorder %s36, 1
          %s558 = scalar_select %p557, %s36, 1
          %s559 = smul.addr %s558, 4
          %s560 = smul.addr %s559, 4
          %s561 = scalar_lea.vmem %s3, %s560
        $region40: #{_lambda_.1} parent=31 // pred_fallthru
          _
        // Predicated region
        $region41: #{_lambda_.1} parent=31 // pred_check
          %p562 = pneg %p154
        $region42: #{_lambda_.1} parent=31 // pred_check_branch
          %564 = sbr.rel (%p562) target = $region44
        $region43: #{_lambda_.1} parent=31 // pred_region
          %p565 = scmp.lt.s32.totalorder %s36, 1
          %s566 = scalar_select %p565, %s36, 1
          %s567 = scalar_lea.vmem %s4, %s566
        $region44: #{_lambda_.1} parent=31 // pred_fallthru
          _
        // Predicated region
        $region45: #{_lambda_.1} parent=31 // pred_check
          %p568 = pneg %p180
        $region46: #{_lambda_.1} parent=31 // pred_check_branch
          %570 = sbr.rel (%p568) target = $region48
        $region47: #{_lambda_.1} parent=31 // pred_region
          %p571 = scmp.lt.s32.totalorder %s36, 1
          %s572 = scalar_select %p571, %s36, 1
          %s573 = smul.addr %s572, 4
          %s574 = smul.addr %s573, 4
          %s575 = scalar_lea.vmem %s5, %s574
        $region48: #{_lambda_.1} parent=31 // pred_fallthru
          _
        // Predicated region
        $region49: #{_lambda_.1} parent=31 // pred_check
          %p576 = pneg %p206
        $region50: #{_lambda_.1} parent=31 // pred_check_branch
          %578 = sbr.rel (%p576) target = $region52
        $region51: #{_lambda_.1} parent=31 // pred_region
          %p579 = scmp.lt.s32.totalorder %s36, 1
          %s580 = scalar_select %p579, %s36, 1
          %s581 = scalar_lea.vmem %s6, %s580
        $region52: #{_lambda_.1} parent=31 // pred_fallthru
          _
        // Predicated region
        $region53: #{_lambda_.1} parent=31 // pred_check
          %p582 = pneg %p232
        $region54: #{_lambda_.1} parent=31 // pred_check_branch
          %584 = sbr.rel (%p582) target = $region56
        $region55: #{_lambda_.1} parent=31 // pred_region
          %p585 = scmp.lt.s32.totalorder %s36, 1
          %s586 = scalar_select %p585, %s36, 1
          %s587 = scalar_lea.vmem %s7, %s586
        $region56: #{_lambda_.1} parent=31 // pred_fallthru
          _
        // Predicated region
        $region57: #{_lambda_.1} parent=31 // pred_check
          %p588 = pneg %p258
        $region58: #{_lambda_.1} parent=31 // pred_check_branch
          %590 = sbr.rel (%p588) target = $region60
        $region59: #{_lambda_.1} parent=31 // pred_region
          %p591 = scmp.lt.s32.totalorder %s36, 1
          %s592 = scalar_select %p591, %s36, 1
          %s593 = scalar_lea.vmem %s8, %s592
        $region60: #{_lambda_.1} parent=31 // pred_fallthru
          _
        // Predicated region
        $region61: #{_lambda_.1} parent=31 // pred_check
          %p594 = pneg %p284
        $region62: #{_lambda_.1} parent=31 // pred_check_branch
          %596 = sbr.rel (%p594) target = $region64
        $region63: #{_lambda_.1} parent=31 // pred_region
          %p597 = scmp.lt.s32.totalorder %s36, 1
          %s598 = scalar_select %p597, %s36, 1
          %s599 = smul.addr %s598, 4
          %s600 = smul.addr %s599, 4
          %s601 = scalar_lea.vmem %s9, %s600
        $region64: #{_lambda_.1} parent=31 // pred_fallthru
          _
        // Predicated region
        $region65: #{_lambda_.1} parent=31 // pred_check
          %p602 = pneg %p310
        $region66: #{_lambda_.1} parent=31 // pred_check_branch
          %604 = sbr.rel (%p602) target = $region68
        $region67: #{_lambda_.1} parent=31 // pred_region
          %p605 = scmp.lt.s32.totalorder %s36, 1
          %s606 = scalar_select %p605, %s36, 1
          %s607 = scalar_lea.vmem %s10, %s606
        $region68: #{_lambda_.1} parent=31 // pred_fallthru
          _
        // Predicated region
        $region69: #{_lambda_.1} parent=31 // pred_check
          %p608 = pneg %p336
        $region70: #{_lambda_.1} parent=31 // pred_check_branch
          %610 = sbr.rel (%p608) target = $region72
        $region71: #{_lambda_.1} parent=31 // pred_region
          %p611 = scmp.lt.s32.totalorder %s36, 1
          %s612 = scalar_select %p611, %s36, 1
          %s613 = smul.addr %s612, 8
          %s614 = smul.addr %s613, 4
          %s615 = scalar_lea.vmem %s11, %s614
        $region72: #{_lambda_.1} parent=31 // pred_fallthru
          _
        // Predicated region
        $region73: #{_lambda_.1} parent=31 // pred_check
          %p616 = pneg %p362
        $region74: #{_lambda_.1} parent=31 // pred_check_branch
          %618 = sbr.rel (%p616) target = $region76
        $region75: #{_lambda_.1} parent=31 // pred_region
          %p619 = scmp.lt.s32.totalorder %s36, 1
          %s620 = scalar_select %p619, %s36, 1
          %s621 = scalar_lea.vmem %s12, %s620
        $region76: #{_lambda_.1} parent=31 // pred_fallthru
          _
        // Predicated region
        $region77: #{_lambda_.1} parent=31 // pred_check
          %p622 = pneg %p388
        $region78: #{_lambda_.1} parent=31 // pred_check_branch
          %624 = sbr.rel (%p622) target = $region80
        $region79: #{_lambda_.1} parent=31 // pred_region
          %p625 = scmp.lt.s32.totalorder %s36, 1
          %s626 = scalar_select %p625, %s36, 1
          %s627 = scalar_lea.vmem %s13, %s626
        $region80: #{_lambda_.1} parent=31 // pred_fallthru
          _
        // Predicated region
        $region81: #{_lambda_.1} parent=31 // pred_check
          %p628 = pneg %p414
        $region82: #{_lambda_.1} parent=31 // pred_check_branch
          %630 = sbr.rel (%p628) target = $region84
        $region83: #{_lambda_.1} parent=31 // pred_region
          %p631 = scmp.lt.s32.totalorder %s36, 1
          %s632 = scalar_select %p631, %s36, 1
          %s633 = scalar_lea.vmem %s14, %s632
        $region84: #{_lambda_.1} parent=31 // pred_fallthru
          _
      $region32: #{_lambda_.1} parent=5 // pred_fallthru
        _
      %p634 = scmp.le.s32.totalorder 1, %s28
      %p635 = scmp.lt.s32.totalorder %s28, 5
      %p636 = pnand %p634, %p635
      %p637 = pneg %p636
      // Predicated region
      $region85: #{_lambda_.1} parent=5 // pred_check
        _
      $region86: #{_lambda_.1} parent=5 // pred_check_branch
        %639 = sbr.rel (%p636) target = $region88
      $region87: #{_lambda_.1} parent=5 // pred_region
        %s640 = ssub.s32 %s28, 1
        %p641 = scmp.lt.s32.totalorder %s37, 1
        %s642 = scalar_select %p641, %s37, 1
        %s643 = smul.addr %s642, 8
        %s644 = scalar_lea.vmem %s0, %s643
        %p645 = pneg %p66
        %p646 = pneg %p63
        %p647 = pneg %p87
        %p648 = pneg %p84
        %p649 = pneg %p108
        %p650 = pneg %p105
        %p651 = scmp.lt.s32.totalorder %s38, 1
        %s652 = scalar_select %p651, %s38, 1
        %s653 = smul.addr %s652, 4
        %s654 = smul.addr %s653, 4
        %s655 = scalar_lea.vmem %s3, %s654
        %p656 = pneg %p134
        %p657 = pneg %p131
        %p658 = scmp.lt.s32.totalorder %s38, 1
        %s659 = scalar_select %p658, %s38, 1
        %s660 = scalar_lea.vmem %s4, %s659
        %p661 = pneg %p160
        %p662 = pneg %p157
        %p663 = scmp.lt.s32.totalorder %s38, 1
        %s664 = scalar_select %p663, %s38, 1
        %s665 = smul.addr %s664, 4
        %s666 = smul.addr %s665, 4
        %s667 = scalar_lea.vmem %s5, %s666
        %p668 = pneg %p186
        %p669 = pneg %p183
        %p670 = scmp.lt.s32.totalorder %s38, 1
        %s671 = scalar_select %p670, %s38, 1
        %s672 = scalar_lea.vmem %s6, %s671
        %p673 = pneg %p212
        %p674 = pneg %p209
        %p675 = scmp.lt.s32.totalorder %s38, 1
        %s676 = scalar_select %p675, %s38, 1
        %s677 = scalar_lea.vmem %s7, %s676
        %p678 = pneg %p238
        %p679 = pneg %p235
        %p680 = scmp.lt.s32.totalorder %s38, 1
        %s681 = scalar_select %p680, %s38, 1
        %s682 = scalar_lea.vmem %s8, %s681
        %p683 = pneg %p264
        %p684 = pneg %p261
        %p685 = scmp.lt.s32.totalorder %s38, 1
        %s686 = scalar_select %p685, %s38, 1
        %s687 = smul.addr %s686, 4
        %s688 = smul.addr %s687, 4
        %s689 = scalar_lea.vmem %s9, %s688
        %p690 = pneg %p290
        %p691 = pneg %p287
        %p692 = scmp.lt.s32.totalorder %s38, 1
        %s693 = scalar_select %p692, %s38, 1
        %s694 = scalar_lea.vmem %s10, %s693
        %p695 = pneg %p316
        %p696 = pneg %p313
        %p697 = scmp.lt.s32.totalorder %s38, 1
        %s698 = scalar_select %p697, %s38, 1
        %s699 = smul.addr %s698, 8
        %s700 = smul.addr %s699, 4
        %s701 = scalar_lea.vmem %s11, %s700
        %p702 = pneg %p342
        %p703 = pneg %p339
        %p704 = scmp.lt.s32.totalorder %s38, 1
        %s705 = scalar_select %p704, %s38, 1
        %s706 = scalar_lea.vmem %s12, %s705
        %p707 = pneg %p368
        %p708 = pneg %p365
        %p709 = scmp.lt.s32.totalorder %s38, 1
        %s710 = scalar_select %p709, %s38, 1
        %s711 = scalar_lea.vmem %s13, %s710
        %p712 = pneg %p394
        %p713 = pneg %p391
        %p714 = scmp.lt.s32.totalorder %s38, 1
        %s715 = scalar_select %p714, %s38, 1
        %s716 = scalar_lea.vmem %s14, %s715
        %p717 = pneg %p420
        %p718 = pneg %p417
        %p719 = pneg %p441
        %p720 = pneg %p438
        %p721 = pneg %p462
        %p722 = pneg %p459
        %p723 = pneg %p488
        %p724 = pneg %p485
        %p725 = scmp.lt.s32.totalorder %s37, 1
        %s726 = scalar_select %p725, %s37, 1
        %s727 = smul.addr %s726, 8
        %s728 = scalar_lea.vmem %s17, %s727
        %p729 = pneg %p516
        %p730 = pneg %p513
        %s731 = sand.u32 %s503, 1
        %s732 = scalar_lea.sflag [#allocation4], %s731
        %s733 = sand.u32 %s503, 1
        %s734 = smul.addr %s733, 8
        %s735 = scalar_lea.vmem [#allocation3], %s734
        %p736 = scmp.lt.s32.totalorder %s37, 1
        %s737 = scalar_select %p736, %s37, 1
        %s738 = smul.addr %s737, 8
        %s739 = scalar_lea.vmem %s0, %s738
        %p740 = scmp.lt.s32.totalorder %s38, 1
        %s741 = scalar_select %p740, %s38, 1
        %s742 = smul.addr %s741, 4
        %s743 = smul.addr %s742, 4
        %s744 = scalar_lea.vmem %s3, %s743
        %p745 = scmp.lt.s32.totalorder %s38, 1
        %s746 = scalar_select %p745, %s38, 1
        %s747 = scalar_lea.vmem %s4, %s746
        %p748 = scmp.lt.s32.totalorder %s38, 1
        %s749 = scalar_select %p748, %s38, 1
        %s750 = smul.addr %s749, 4
        %s751 = smul.addr %s750, 4
        %s752 = scalar_lea.vmem %s5, %s751
        %p753 = scmp.lt.s32.totalorder %s38, 1
        %s754 = scalar_select %p753, %s38, 1
        %s755 = scalar_lea.vmem %s6, %s754
        %p756 = scmp.lt.s32.totalorder %s38, 1
        %s757 = scalar_select %p756, %s38, 1
        %s758 = scalar_lea.vmem %s7, %s757
        %p759 = scmp.lt.s32.totalorder %s38, 1
        %s760 = scalar_select %p759, %s38, 1
        %s761 = scalar_lea.vmem %s8, %s760
        %p762 = scmp.lt.s32.totalorder %s38, 1
        %s763 = scalar_select %p762, %s38, 1
        %s764 = smul.addr %s763, 4
        %s765 = smul.addr %s764, 4
        %s766 = scalar_lea.vmem %s9, %s765
        %p767 = scmp.lt.s32.totalorder %s38, 1
        %s768 = scalar_select %p767, %s38, 1
        %s769 = scalar_lea.vmem %s10, %s768
        %p770 = scmp.lt.s32.totalorder %s38, 1
        %s771 = scalar_select %p770, %s38, 1
        %s772 = smul.addr %s771, 8
        %s773 = smul.addr %s772, 4
        %s774 = scalar_lea.vmem %s11, %s773
        %p775 = scmp.lt.s32.totalorder %s38, 1
        %s776 = scalar_select %p775, %s38, 1
        %s777 = scalar_lea.vmem %s12, %s776
        %p778 = scmp.lt.s32.totalorder %s38, 1
        %s779 = scalar_select %p778, %s38, 1
        %s780 = scalar_lea.vmem %s13, %s779
        %p781 = scmp.lt.s32.totalorder %s38, 1
        %s782 = scalar_select %p781, %s38, 1
        %s783 = scalar_lea.vmem %s14, %s782
        %p784 = scmp.lt.s32.totalorder %s37, 1
        %s785 = scalar_select %p784, %s37, 1
        %s786 = smul.addr %s785, 8
        %s787 = scalar_lea.vmem %s17, %s786
        %p789 = scmp.eq.s32.totalorder %s38, 0
        // Predicated region
        $region89: #{_lambda_.1} parent=87 // pred_check
          %p790 = pneg %p789
        $region90: #{_lambda_.1} parent=87 // pred_check_branch
          %792 = sbr.rel (%p790) target = $region92
        $region91: #{_lambda_.1} parent=87 // pred_region
          %v793 = vld [vmem:[%s739] sm:$0xff]
          %v794 = vld [vmem:[%s1] sm:$0xf]
          %v795 = vld [vmem:[%s1 + $0x4] sm:$0xf]
          %v796 = vpack.c.bf16 %v793, %v793
          %v797 = vld [vmem:[%s2] sm:$0x1]
          %v799 = vperm.slane %v797, 0
          %v803 = vunpack.c.l.b16 %v794
          %v804 = vunpack.c.l.b16 %v795
          %v805 = vpack.c.b16 %v804, %v803
          %vm807 = vcmask 130048
          %v809 = vsel %vm807, %v796, 0
          %811 = vmatpush.bf16.msra.mxu0 0
          %812 = vmatpush.bf16.msra.mxu0 0
          %813 = vmatpush.bf16.msra.mxu0 0
          %814 = vmatpush.bf16.msra.mxu0 0
          %815 = vmatpush.bf16.msra.mxu0 0
          %816 = vmatpush.bf16.msra.mxu0 0
          %817 = vmatpush.bf16.msra.mxu0 0
          %818 = vmatpush.bf16.msra.mxu0 %v805
          %819 = vmatmul.bf16.gmra.mxu0 %v809
          %v820 = vpop.f32.mrf.mxu0
          %v821 = vadd.f32 %v799, %v820
          %v822 = vpop.f32.mrf.mxu0
          %823 = vdwg.mxu0
          %vm824 = vcmask 261120
          %825 = vst.msk [vmem:[#allocation2] sm:$0xff] %vm824, %v821
        $region92: #{_lambda_.1} parent=87 // pred_fallthru
          _
        %v826 = vld [vmem:[#allocation2] sm:$0xff]
        %v827 = vld [vmem:[%s744] sm:$0xf]
        %v828 = vld [vmem:[%s744 + $0x4] sm:$0xf]
        %v829 = vld [vmem:[%s744 + $0x8] sm:$0xf]
        %v830 = vld [vmem:[%s744 + $0xc] sm:$0xf]
        %v831 = vpack.c.bf16 %v826, %v826
        %v832 = vld [vmem:[%s747] sm:$0x1]
        %v834 = vperm.slane %v832, 0
        %v840 = vunpack.c.l.b16 %v827
        %v841 = vunpack.c.l.b16 %v828
        %v842 = vunpack.c.l.b16 %v829
        %v843 = vunpack.c.l.b16 %v830
        %v844 = vpack.c.b16 %v841, %v840
        %v845 = vpack.c.b16 %v843, %v842
        %vm848 = vcmask 261120
        %v850 = vsel %vm848, %v831, 0
        %852 = vmatpush.bf16.msra.mxu0 0
        %853 = vmatpush.bf16.msra.mxu0 0
        %854 = vmatpush.bf16.msra.mxu0 0
        %855 = vmatpush.bf16.msra.mxu0 0
        %856 = vmatpush.bf16.msra.mxu0 0
        %857 = vmatpush.bf16.msra.mxu0 0
        %858 = vmatpush.bf16.msra.mxu0 %v845
        %859 = vmatpush.bf16.msra.mxu0 %v844
        %860 = vmatmul.bf16.gmra.mxu0 %v850
        %v861 = vpop.f32.mrf.mxu0
        %v862 = vadd.f32 %v834, %v861
        %v863 = vpop.f32.mrf.mxu0
        %864 = vdwg.mxu0
        %v865 = vpack.c.bf16 %v862, %v862
        %867 = vrot.lane.b32.xlu0 %v865, 96
        %v868 = vpop.permute.xlu0 %867
        %vm869 = vcmask 64512
        %v871 = vsel %vm869, %v865, 0
        %v874 = vsel %vm869, %v868, 0
        %876 = vmatpush.bf16.xpose.msra.mxu0 0
        %877 = vmatpush.bf16.xpose.msra.mxu0 0
        %878 = vmatpush.bf16.xpose.msra.mxu0 0
        %879 = vmatpush.bf16.xpose.msra.mxu0 0
        %880 = vmatpush.bf16.xpose.msra.mxu0 0
        %881 = vmatpush.bf16.xpose.msra.mxu0 0
        %882 = vmatpush.bf16.xpose.msra.mxu0 0
        %883 = vmatpush.bf16.xpose.msra.mxu0 %v874
        %884 = vmatmul.bf16.gmra.mxu0 %v871
        %v885 = vpop.f32.mrf.mxu0
        %v886 = vadd.f32 0.0, %v885
        %v887 = vpop.f32.mrf.mxu0
        %888 = vdwg.mxu0
        %v889 = vsel %vm869, %v886, -inf
        %890 = vmax.xlane.f32.xlu0 %v889
        %v891 = vpop.xlane.xlu0 %890
        %v892 = vsub.f32 %v886, %v891
        %v893 = vmul.f32 %v892, 1.442695
        %v894 = vpow.pop %v893
        %v895 = vsel %vm869, %v894, 0.0
        %896 = vadd.xlane.f32.xlu0 %v895
        %v897 = vpop.xlane.xlu0 %896
        %v898 = vrcp.pop %v897
        %v899 = vmul.f32 %v897, %v898
        %v900 = vsub.f32 1.0, %v899
        %v901 = vmul.f32 %v898, %v900
        %v902 = vadd.f32 %v898, %v901
        %vm903 = vweird.f32 %v897
        %vm904 = vweird.f32 %v898
        %vm905 = vmor %vm903, %vm904
        %v906 = vsel %vm905, %v898, %v902
        %v907 = vand.u32 2147483647, %v897
        %vm908 = vcmp.eq.f32.partialorder %v907, 8.507059e+37
        %v909 = vand.u32 %v897, 2147483648
        %v910 = vor.u32 1.1754944e-38, %v909
        %v911 = vsel %vm908, %v910, %v906
        %v912 = vmul.f32 1.0, %v911
        %v913 = vmul.f32 %v894, %v912
        %v914 = vadd.f32 %v913, 0.0
        %v915 = vrcp.pop %v897
        %v916 = vmul.f32 %v894, %v915
        %v917 = vpack.c.bf16 %v916, %v916
        %918 = vrot.lane.b32.xlu0 %v865, 64
        %v919 = vpop.permute.xlu0 %918
        %v921 = vsel %vm869, %v917, 0
        %vm923 = vcmask 1043456
        %v925 = vsel %vm923, %v919, 0
        %927 = vmatpush.bf16.msra.mxu0 0
        %928 = vmatpush.bf16.msra.mxu0 0
        %929 = vmatpush.bf16.msra.mxu0 0
        %930 = vmatpush.bf16.msra.mxu0 0
        %931 = vmatpush.bf16.msra.mxu0 0
        %932 = vmatpush.bf16.msra.mxu0 0
        %933 = vmatpush.bf16.msra.mxu0 0
        %934 = vmatpush.bf16.msra.mxu0 %v925
        %935 = vmatmul.bf16.gmra.mxu0 %v921
        %v936 = vpop.f32.mrf.mxu0
        %v937 = vadd.f32 0.0, %v936
        %v938 = vpop.f32.mrf.mxu0
        %939 = vdwg.mxu0
        %940 = vrot.lane.b32.xlu0 %v865, 120
        %v941 = vpop.permute.xlu0 %940
        %942 = vrot.lane.b32.xlu0 %v865, 88
        %v943 = vpop.permute.xlu0 %942
        %v945 = vsel %vm869, %v941, 0
        %v948 = vsel %vm869, %v943, 0
        %950 = vmatpush.bf16.xpose.msra.mxu0 0
        %951 = vmatpush.bf16.xpose.msra.mxu0 0
        %952 = vmatpush.bf16.xpose.msra.mxu0 0
        %953 = vmatpush.bf16.xpose.msra.mxu0 0
        %954 = vmatpush.bf16.xpose.msra.mxu0 0
        %955 = vmatpush.bf16.xpose.msra.mxu0 0
        %956 = vmatpush.bf16.xpose.msra.mxu0 0
        %957 = vmatpush.bf16.xpose.msra.mxu0 %v948
        %958 = vmatmul.bf16.gmra.mxu0 %v945
        %v959 = vpop.f32.mrf.mxu0
        %v960 = vadd.f32 0.0, %v959
        %v961 = vpop.f32.mrf.mxu0
        %962 = vdwg.mxu0
        %v963 = vsel %vm869, %v960, -inf
        %964 = vmax.xlane.f32.xlu0 %v963
        %v965 = vpop.xlane.xlu0 %964
        %v966 = vsub.f32 %v960, %v965
        %v967 = vmul.f32 %v966, 1.442695
        %v968 = vpow.pop %v967
        %v969 = vsel %vm869, %v968, 0.0
        %970 = vadd.xlane.f32.xlu0 %v969
        %v971 = vpop.xlane.xlu0 %970
        %v972 = vrcp.pop %v971
        %v973 = vmul.f32 %v971, %v972
        %v974 = vsub.f32 1.0, %v973
        %v975 = vmul.f32 %v972, %v974
        %v976 = vadd.f32 %v972, %v975
        %vm977 = vweird.f32 %v971
        %vm978 = vweird.f32 %v972
        %vm979 = vmor %vm977, %vm978
        %v980 = vsel %vm979, %v972, %v976
        %v981 = vand.u32 2147483647, %v971
        %vm982 = vcmp.eq.f32.partialorder %v981, 8.507059e+37
        %v983 = vand.u32 %v971, 2147483648
        %v984 = vor.u32 1.1754944e-38, %v983
        %v985 = vsel %vm982, %v984, %v980
        %v986 = vmul.f32 1.0, %v985
        %v987 = vmul.f32 %v968, %v986
        %v988 = vadd.f32 %v914, %v987
        %v989 = vrcp.pop %v971
        %v990 = vmul.f32 %v968, %v989
        %v991 = vpack.c.bf16 %v990, %v990
        %992 = vrot.lane.b32.xlu0 %v865, 56
        %v993 = vpop.permute.xlu0 %992
        %v995 = vsel %vm869, %v991, 0
        %v998 = vsel %vm923, %v993, 0
        %1000 = vmatpush.bf16.msra.mxu0 0
        %1001 = vmatpush.bf16.msra.mxu0 0
        %1002 = vmatpush.bf16.msra.mxu0 0
        %1003 = vmatpush.bf16.msra.mxu0 0
        %1004 = vmatpush.bf16.msra.mxu0 0
        %1005 = vmatpush.bf16.msra.mxu0 0
        %1006 = vmatpush.bf16.msra.mxu0 0
        %1007 = vmatpush.bf16.msra.mxu0 %v998
        %1008 = vmatmul.bf16.gmra.mxu0 %v995
        %v1009 = vpop.f32.mrf.mxu0
        %v1010 = vadd.f32 0.0, %v1009
        %v1011 = vpop.f32.mrf.mxu0
        %1012 = vdwg.mxu0
        %1013 = vrot.lane.b32.xlu0 %v865, 112
        %v1014 = vpop.permute.xlu0 %1013
        %1015 = vrot.lane.b32.xlu0 %v865, 80
        %v1016 = vpop.permute.xlu0 %1015
        %v1018 = vsel %vm869, %v1014, 0
        %v1021 = vsel %vm869, %v1016, 0
        %1023 = vmatpush.bf16.xpose.msra.mxu0 0
        %1024 = vmatpush.bf16.xpose.msra.mxu0 0
        %1025 = vmatpush.bf16.xpose.msra.mxu0 0
        %1026 = vmatpush.bf16.xpose.msra.mxu0 0
        %1027 = vmatpush.bf16.xpose.msra.mxu0 0
        %1028 = vmatpush.bf16.xpose.msra.mxu0 0
        %1029 = vmatpush.bf16.xpose.msra.mxu0 0
        %1030 = vmatpush.bf16.xpose.msra.mxu0 %v1021
        %1031 = vmatmul.bf16.gmra.mxu0 %v1018
        %v1032 = vpop.f32.mrf.mxu0
        %v1033 = vadd.f32 0.0, %v1032
        %v1034 = vpop.f32.mrf.mxu0
        %1035 = vdwg.mxu0
        %v1036 = vsel %vm869, %v1033, -inf
        %1037 = vmax.xlane.f32.xlu0 %v1036
        %v1038 = vpop.xlane.xlu0 %1037
        %v1039 = vsub.f32 %v1033, %v1038
        %v1040 = vmul.f32 %v1039, 1.442695
        %v1041 = vpow.pop %v1040
        %v1042 = vsel %vm869, %v1041, 0.0
        %1043 = vadd.xlane.f32.xlu0 %v1042
        %v1044 = vpop.xlane.xlu0 %1043
        %v1045 = vrcp.pop %v1044
        %v1046 = vmul.f32 %v1044, %v1045
        %v1047 = vsub.f32 1.0, %v1046
        %v1048 = vmul.f32 %v1045, %v1047
        %v1049 = vadd.f32 %v1045, %v1048
        %vm1050 = vweird.f32 %v1044
        %vm1051 = vweird.f32 %v1045
        %vm1052 = vmor %vm1050, %vm1051
        %v1053 = vsel %vm1052, %v1045, %v1049
        %v1054 = vand.u32 2147483647, %v1044
        %vm1055 = vcmp.eq.f32.partialorder %v1054, 8.507059e+37
        %v1056 = vand.u32 %v1044, 2147483648
        %v1057 = vor.u32 1.1754944e-38, %v1056
        %v1058 = vsel %vm1055, %v1057, %v1053
        %v1059 = vmul.f32 1.0, %v1058
        %v1060 = vmul.f32 %v1041, %v1059
        %v1061 = vadd.f32 %v988, %v1060
        %v1062 = vrcp.pop %v1044
        %v1063 = vmul.f32 %v1041, %v1062
        %v1064 = vpack.c.bf16 %v1063, %v1063
        %1065 = vrot.lane.b32.xlu0 %v865, 48
        %v1066 = vpop.permute.xlu0 %1065
        %v1068 = vsel %vm869, %v1064, 0
        %v1071 = vsel %vm923, %v1066, 0
        %1073 = vmatpush.bf16.msra.mxu0 0
        %1074 = vmatpush.bf16.msra.mxu0 0
        %1075 = vmatpush.bf16.msra.mxu0 0
        %1076 = vmatpush.bf16.msra.mxu0 0
        %1077 = vmatpush.bf16.msra.mxu0 0
        %1078 = vmatpush.bf16.msra.mxu0 0
        %1079 = vmatpush.bf16.msra.mxu0 0
        %1080 = vmatpush.bf16.msra.mxu0 %v1071
        %1081 = vmatmul.bf16.gmra.mxu0 %v1068
        %v1082 = vpop.f32.mrf.mxu0
        %v1083 = vadd.f32 0.0, %v1082
        %v1084 = vpop.f32.mrf.mxu0
        %1085 = vdwg.mxu0
        %1086 = vrot.lane.b32.xlu0 %v865, 104
        %v1087 = vpop.permute.xlu0 %1086
        %1088 = vrot.lane.b32.xlu0 %v865, 72
        %v1089 = vpop.permute.xlu0 %1088
        %v1091 = vsel %vm869, %v1087, 0
        %v1094 = vsel %vm869, %v1089, 0
        %1096 = vmatpush.bf16.xpose.msra.mxu0 0
        %1097 = vmatpush.bf16.xpose.msra.mxu0 0
        %1098 = vmatpush.bf16.xpose.msra.mxu0 0
        %1099 = vmatpush.bf16.xpose.msra.mxu0 0
        %1100 = vmatpush.bf16.xpose.msra.mxu0 0
        %1101 = vmatpush.bf16.xpose.msra.mxu0 0
        %1102 = vmatpush.bf16.xpose.msra.mxu0 0
        %1103 = vmatpush.bf16.xpose.msra.mxu0 %v1094
        %1104 = vmatmul.bf16.gmra.mxu0 %v1091
        %v1105 = vpop.f32.mrf.mxu0
        %v1106 = vadd.f32 0.0, %v1105
        %v1107 = vpop.f32.mrf.mxu0
        %1108 = vdwg.mxu0
        %v1109 = vsel %vm869, %v1106, -inf
        %1110 = vmax.xlane.f32.xlu0 %v1109
        %v1111 = vpop.xlane.xlu0 %1110
        %v1112 = vsub.f32 %v1106, %v1111
        %v1113 = vmul.f32 %v1112, 1.442695
        %v1114 = vpow.pop %v1113
        %v1115 = vsel %vm869, %v1114, 0.0
        %1116 = vadd.xlane.f32.xlu0 %v1115
        %v1117 = vpop.xlane.xlu0 %1116
        %v1118 = vrcp.pop %v1117
        %v1119 = vmul.f32 %v1117, %v1118
        %v1120 = vsub.f32 1.0, %v1119
        %v1121 = vmul.f32 %v1118, %v1120
        %v1122 = vadd.f32 %v1118, %v1121
        %vm1123 = vweird.f32 %v1117
        %vm1124 = vweird.f32 %v1118
        %vm1125 = vmor %vm1123, %vm1124
        %v1126 = vsel %vm1125, %v1118, %v1122
        %v1127 = vand.u32 2147483647, %v1117
        %vm1128 = vcmp.eq.f32.partialorder %v1127, 8.507059e+37
        %v1129 = vand.u32 %v1117, 2147483648
        %v1130 = vor.u32 1.1754944e-38, %v1129
        %v1131 = vsel %vm1128, %v1130, %v1126
        %v1132 = vmul.f32 1.0, %v1131
        %v1133 = vmul.f32 %v1114, %v1132
        %v1134 = vadd.f32 %v1061, %v1133
        %v1135 = vrcp.pop %v1117
        %v1136 = vmul.f32 %v1114, %v1135
        %v1137 = vpack.c.bf16 %v1136, %v1136
        %1138 = vrot.lane.b32.xlu0 %v865, 40
        %v1139 = vpop.permute.xlu0 %1138
        %v1141 = vsel %vm869, %v1137, 0
        %v1144 = vsel %vm923, %v1139, 0
        %1146 = vmatpush.bf16.msra.mxu0 0
        %1147 = vmatpush.bf16.msra.mxu0 0
        %1148 = vmatpush.bf16.msra.mxu0 0
        %1149 = vmatpush.bf16.msra.mxu0 0
        %1150 = vmatpush.bf16.msra.mxu0 0
        %1151 = vmatpush.bf16.msra.mxu0 0
        %1152 = vmatpush.bf16.msra.mxu0 0
        %1153 = vmatpush.bf16.msra.mxu0 %v1144
        %1154 = vmatmul.bf16.gmra.mxu0 %v1141
        %v1155 = vpop.f32.mrf.mxu0
        %v1156 = vadd.f32 0.0, %v1155
        %v1157 = vpop.f32.mrf.mxu0
        %1158 = vdwg.mxu0
        %1160 = vrot.lane.b32.xlu0 %v1010, 8
        %v1161 = vpop.permute.xlu0 %1160
        %1164 = vrot.lane.b32.xlu0 %v1083, 16
        %v1165 = vpop.permute.xlu0 %1164
        %1168 = vrot.lane.b32.xlu0 %v1156, 24
        %v1169 = vpop.permute.xlu0 %1168
        %v1171 = vsel %vm869, %v937, %v1161
        %vm1172 = vcmask 130048
        %v1173 = vsel %vm1172, %v1171, %v1165
        %vm1174 = vcmask 195584
        %v1175 = vsel %vm1174, %v1173, %v1169
        %v1176 = vld [vmem:[%s752] sm:$0xf]
        %v1177 = vld [vmem:[%s752 + $0x4] sm:$0xf]
        %v1178 = vld [vmem:[%s752 + $0x8] sm:$0xf]
        %v1179 = vld [vmem:[%s752 + $0xc] sm:$0xf]
        %v1180 = vpack.c.bf16 %v1175, %v1175
        %v1181 = vld [vmem:[%s755] sm:$0x1]
        %v1183 = vperm.slane %v1181, 0
        %v1189 = vunpack.c.l.b16 %v1176
        %v1190 = vunpack.c.l.b16 %v1177
        %v1191 = vunpack.c.l.b16 %v1178
        %v1192 = vunpack.c.l.b16 %v1179
        %v1193 = vpack.c.b16 %v1190, %v1189
        %v1194 = vpack.c.b16 %v1192, %v1191
        %v1198 = vsel %vm848, %v1180, 0
        %1200 = vmatpush.bf16.msra.mxu0 0
        %1201 = vmatpush.bf16.msra.mxu0 0
        %1202 = vmatpush.bf16.msra.mxu0 0
        %1203 = vmatpush.bf16.msra.mxu0 0
        %1204 = vmatpush.bf16.msra.mxu0 0
        %1205 = vmatpush.bf16.msra.mxu0 0
        %1206 = vmatpush.bf16.msra.mxu0 %v1194
        %1207 = vmatpush.bf16.msra.mxu0 %v1193
        %1208 = vmatmul.bf16.gmra.mxu0 %v1198
        %v1209 = vpop.f32.mrf.mxu0
        %v1210 = vadd.f32 %v1183, %v1209
        %v1211 = vpop.f32.mrf.mxu0
        %1212 = vdwg.mxu0
        %v1213 = vmul.f32 %v1134, 0.25
        %1214 = vst.msk [vmem:[%s735] sm:$0xff] %vm869, %v1213
        %v1215 = vadd.f32 %v826, %v1210
        %v1216 = vsel %vm848, %v1215, 0.0
        %1217 = vadd.xlane.f32.xlu0 %v1216
        %v1218 = vpop.xlane.xlu0 %1217
        %v1219 = vrcp.pop 32.0
        %v1220 = vmul.f32 32.0, %v1219
        %v1221 = vsub.f32 1.0, %v1220
        %v1222 = vmul.f32 %v1219, %v1221
        %v1223 = vadd.f32 %v1219, %v1222
        %vm1224 = vweird.f32 %v1219
        %v1225 = vsel %vm1224, %v1219, %v1223
        %v1226 = vmul.f32 %v1218, %v1225
        %v1227 = vsub.f32 %v1215, %v1226
        %v1228 = vmul.f32 %v1227, %v1227
        %v1229 = vsel %vm848, %v1228, 0.0
        %1230 = vadd.xlane.f32.xlu0 %v1229
        %v1231 = vpop.xlane.xlu0 %1230
        %v1232 = vmul.f32 %v1231, %v1225
        %v1233 = vadd.f32 %v1232, 1e-05
        %v1234 = vrsqrt.pop %v1233
        %v1235 = vmul.f32 %v1234, %v1233
        %v1236 = vmul.f32 %v1235, %v1234
        %v1237 = vmul.f32 0.5, %v1236
        %v1238 = vsub.f32 1.5, %v1237
        %v1239 = vmul.f32 %v1234, %v1238
        %vm1240 = vweird.f32 %v1233
        %vm1241 = vweird.f32 %v1234
        %vm1242 = vmor %vm1240, %vm1241
        %v1243 = vsel %vm1242, %v1234, %v1239
        %v1244 = vmul.f32 %v1227, %v1243
        %v1245 = vld [vmem:[%s758] sm:$0x1]
        %v1247 = vperm.slane %v1245, 0
        %v1249 = vmul.f32 %v1244, %v1247
        %v1250 = vld [vmem:[%s761] sm:$0x1]
        %v1252 = vperm.slane %v1250, 0
        %v1254 = vadd.f32 %v1249, %v1252
        %v1255 = vld [vmem:[%s766] sm:$0xf]
        %v1256 = vld [vmem:[%s766 + $0x4] sm:$0xf]
        %v1257 = vld [vmem:[%s766 + $0x8] sm:$0xf]
        %v1258 = vld [vmem:[%s766 + $0xc] sm:$0xf]
        %v1259 = vpack.c.bf16 %v1254, %v1254
        %v1260 = vld [vmem:[%s769] sm:$0x1]
        %v1262 = vperm.slane %v1260, 0
        %v1268 = vunpack.c.l.b16 %v1255
        %v1269 = vunpack.c.l.b16 %v1256
        %v1270 = vunpack.c.l.b16 %v1257
        %v1271 = vunpack.c.l.b16 %v1258
        %v1272 = vpack.c.b16 %v1269, %v1268
        %v1273 = vpack.c.b16 %v1271, %v1270
        %v1277 = vsel %vm848, %v1259, 0
        %1279 = vmatpush.bf16.msra.mxu0 0
        %1280 = vmatpush.bf16.msra.mxu0 0
        %1281 = vmatpush.bf16.msra.mxu0 0
        %1282 = vmatpush.bf16.msra.mxu0 0
        %1283 = vmatpush.bf16.msra.mxu0 0
        %1284 = vmatpush.bf16.msra.mxu0 0
        %1285 = vmatpush.bf16.msra.mxu0 %v1273
        %1286 = vmatpush.bf16.msra.mxu0 %v1272
        %1287 = vmatmul.bf16.gmra.mxu0 %v1277
        %v1288 = vpop.f32.mrf.mxu0
        %v1289 = vadd.f32 %v1262, %v1288
        %v1290 = vpop.f32.mrf.mxu0
        %1291 = vdwg.mxu0
        %v1292 = vmax.f32 %v1289, 0.0
        %v1293 = vld [vmem:[%s774] sm:$0xf]
        %v1294 = vld [vmem:[%s774 + $0x4] sm:$0xf]
        %v1295 = vld [vmem:[%s774 + $0x8] sm:$0xf]
        %v1296 = vld [vmem:[%s774 + $0xc] sm:$0xf]
        %v1297 = vld [vmem:[%s774 + $0x10] sm:$0xf]
        %v1298 = vld [vmem:[%s774 + $0x14] sm:$0xf]
        %v1299 = vld [vmem:[%s774 + $0x18] sm:$0xf]
        %v1300 = vld [vmem:[%s774 + $0x1c] sm:$0xf]
        %v1301 = vpack.c.bf16 %v1292, %v1292
        %v1302 = vld [vmem:[%s777] sm:$0x1]
        %v1304 = vperm.slane %v1302, 0
        %v1314 = vunpack.c.l.b16 %v1293
        %v1315 = vunpack.c.l.b16 %v1294
        %v1316 = vunpack.c.l.b16 %v1295
        %v1317 = vunpack.c.l.b16 %v1296
        %v1318 = vunpack.c.l.b16 %v1297
        %v1319 = vunpack.c.l.b16 %v1298
        %v1320 = vunpack.c.l.b16 %v1299
        %v1321 = vunpack.c.l.b16 %v1300
        %v1322 = vpack.c.b16 %v1315, %v1314
        %v1323 = vpack.c.b16 %v1317, %v1316
        %v1324 = vpack.c.b16 %v1319, %v1318
        %v1325 = vpack.c.b16 %v1321, %v1320
        %vm1330 = vcmask 523264
        %v1332 = vsel %vm1330, %v1301, 0
        %1334 = vmatpush.bf16.msra.mxu0 0
        %1335 = vmatpush.bf16.msra.mxu0 0
        %1336 = vmatpush.bf16.msra.mxu0 0
        %1337 = vmatpush.bf16.msra.mxu0 0
        %1338 = vmatpush.bf16.msra.mxu0 %v1325
        %1339 = vmatpush.bf16.msra.mxu0 %v1324
        %1340 = vmatpush.bf16.msra.mxu0 %v1323
        %1341 = vmatpush.bf16.msra.mxu0 %v1322
        %1342 = vmatmul.bf16.gmra.mxu0 %v1332
        %v1343 = vpop.f32.mrf.mxu0
        %v1344 = vadd.f32 %v1304, %v1343
        %v1345 = vpop.f32.mrf.mxu0
        %1346 = vdwg.mxu0
        %v1347 = vadd.f32 %v1254, %v1344
        %v1348 = vsel %vm848, %v1347, 0.0
        %1349 = vadd.xlane.f32.xlu0 %v1348
        %v1350 = vpop.xlane.xlu0 %1349
        %v1351 = vmul.f32 %v1350, %v1225
        %v1352 = vsub.f32 %v1347, %v1351
        %v1353 = vmul.f32 %v1352, %v1352
        %v1354 = vsel %vm848, %v1353, 0.0
        %1355 = vadd.xlane.f32.xlu0 %v1354
        %v1356 = vpop.xlane.xlu0 %1355
        %v1357 = vmul.f32 %v1356, %v1225
        %v1358 = vadd.f32 %v1357, 1e-05
        %v1359 = vrsqrt.pop %v1358
        %v1360 = vmul.f32 %v1359, %v1358
        %v1361 = vmul.f32 %v1360, %v1359
        %v1362 = vmul.f32 0.5, %v1361
        %v1363 = vsub.f32 1.5, %v1362
        %v1364 = vmul.f32 %v1359, %v1363
        %vm1365 = vweird.f32 %v1358
        %vm1366 = vweird.f32 %v1359
        %vm1367 = vmor %vm1365, %vm1366
        %v1368 = vsel %vm1367, %v1359, %v1364
        %v1369 = vmul.f32 %v1352, %v1368
        %v1370 = vld [vmem:[%s780] sm:$0x1]
        %v1372 = vperm.slane %v1370, 0
        %v1374 = vmul.f32 %v1369, %v1372
        %v1375 = vld [vmem:[%s783] sm:$0x1]
        %v1377 = vperm.slane %v1375, 0
        %v1379 = vadd.f32 %v1374, %v1377
        %1380 = vst.msk [vmem:[#allocation2] sm:$0xff] %vm848, %v1379
        %p1381 = scmp.eq.s32.totalorder %s38, 1
        // Predicated region
        $region93: #{_lambda_.1} parent=87 // pred_check
          %p1382 = pneg %p1381
        $region94: #{_lambda_.1} parent=87 // pred_check_branch
          %1384 = sbr.rel (%p1382) target = $region96
        $region95: #{_lambda_.1} parent=87 // pred_region
          %v1385 = vld [vmem:[%s15] sm:$0xf]
          %v1386 = vld [vmem:[%s15 + $0x4] sm:$0xf]
          %v1387 = vld [vmem:[%s15 + $0x8] sm:$0xf]
          %v1388 = vld [vmem:[%s15 + $0xc] sm:$0xf]
          %v1389 = vpack.c.bf16 %v1379, %v1379
          %v1390 = vld [vmem:[%s16] sm:$0x1]
          %v1392 = vperm.slane %v1390, 0
          %v1398 = vunpack.c.l.b16 %v1385
          %v1399 = vunpack.c.l.b16 %v1386
          %v1400 = vunpack.c.l.b16 %v1387
          %v1401 = vunpack.c.l.b16 %v1388
          %v1402 = vpack.c.b16 %v1399, %v1398
          %v1403 = vpack.c.b16 %v1401, %v1400
          %v1407 = vsel %vm848, %v1389, 0
          %1409 = vmatpush.bf16.msra.mxu0 0
          %1410 = vmatpush.bf16.msra.mxu0 0
          %1411 = vmatpush.bf16.msra.mxu0 0
          %1412 = vmatpush.bf16.msra.mxu0 0
          %1413 = vmatpush.bf16.msra.mxu0 0
          %1414 = vmatpush.bf16.msra.mxu0 0
          %1415 = vmatpush.bf16.msra.mxu0 %v1403
          %1416 = vmatpush.bf16.msra.mxu0 %v1402
          %1417 = vmatmul.bf16.gmra.mxu0 %v1407
          %v1418 = vpop.f32.mrf.mxu0
          %v1419 = vadd.f32 %v1392, %v1418
          %v1420 = vpop.f32.mrf.mxu0
          %1421 = vdwg.mxu0
          %vm1422 = vcmask 39936
          %1423 = vst.msk [vmem:[%s787] sm:$0xff] %vm1422, %v1419
        $region96: #{_lambda_.1} parent=87 // pred_fallthru
          _
        %p1424 = scmp.lt.s32.totalorder %s37, 1
        %s1425 = scalar_select %p1424, %s37, 1
        %s1426 = smul.addr %s1425, 8
        %s1427 = scalar_lea.vmem %s17, %s1426
        %s1428 = sand.u32 %s503, 1
        %s1429 = scalar_lea.sflag [#allocation4], %s1428
        %s1430 = sand.u32 %s503, 1
        %s1431 = smul.addr %s1430, 8
        %s1432 = scalar_lea.vmem [#allocation3], %s1431
        // Predicated region
        $region97: #{_lambda_.1} parent=87 // pred_check
          %p1433 = pneg %p485
        $region98: #{_lambda_.1} parent=87 // pred_check_branch
          %1435 = sbr.rel (%p1433) target = $region100
        $region99: #{_lambda_.1} parent=87 // pred_region
          _
        $region100: #{_lambda_.1} parent=87 // pred_fallthru
          _
        // Predicated region
        $region101: #{_lambda_.1} parent=87 // pred_check
          %p1436 = pneg %p513
        $region102: #{_lambda_.1} parent=87 // pred_check_branch
          %1438 = sbr.rel (%p1436) target = $region104
        $region103: #{_lambda_.1} parent=87 // pred_region
          %1440 = vsyncadd %s1429, 0
          %s1441 = smul.addr %s38, 2
          %s1442 = sadd.s32 %s37, %s1441
          %s1443 = smul.addr %s1442, 8
          %s1444 = scalar_lea.hbm %s18, %s1443
          %s1446 = sshll.u32 %s1432, 4
          %s1447 = int_to_ptr.vmem [resolvable:$true] %s1446
          %s1448 = sshll.u32 %s1444, 4
          %s1449 = int_to_ptr.hbm [resolvable:$true] %s1448
          %1451 = dma.vmem_to_hbm [thread:$0]  %s1447, 128, %s1449, %s1429
        $region104: #{_lambda_.1} parent=87 // pred_fallthru
          _
      $region88: #{_lambda_.1} parent=5 // pred_fallthru
        _
      %p1452 = scmp.le.s32.totalorder 2, %s28
      // Predicated region
      $region105: #{_lambda_.1} parent=5 // pred_check
        %p1453 = pneg %p1452
      $region106: #{_lambda_.1} parent=5 // pred_check_branch
        %1455 = sbr.rel (%p1453) target = $region108
      $region107: #{_lambda_.1} parent=5 // pred_region
        %s1456 = ssub.s32 %s28, 2
        // Predicated region
        $region109: #{_lambda_.1} parent=107 // pred_check
          %p1457 = pneg %p491
        $region110: #{_lambda_.1} parent=107 // pred_check_branch
          %1459 = sbr.rel (%p1457) target = $region112
        $region111: #{_lambda_.1} parent=107 // pred_region
          %p1460 = scmp.lt.s32.totalorder %s39, 1
          %s1461 = scalar_select %p1460, %s39, 1
          %s1462 = smul.addr %s1461, 8
          %s1463 = scalar_lea.vmem %s17, %s1462
        $region112: #{_lambda_.1} parent=107 // pred_fallthru
          _
        // Predicated region
        $region113: #{_lambda_.1} parent=107 // pred_check
          %p1464 = pneg %p519
        $region114: #{_lambda_.1} parent=107 // pred_check_branch
          %1466 = sbr.rel (%p1464) target = $region116
        $region115: #{_lambda_.1} parent=107 // pred_region
          %s1467 = sand.u32 %s504, 1
          %s1468 = scalar_lea.sflag [#allocation4], %s1467
          %s1469 = sand.u32 %s504, 1
          %s1470 = smul.addr %s1469, 8
          %s1471 = scalar_lea.vmem [#allocation3], %s1470
          %1473 = dma.done %s1468, 128
        $region116: #{_lambda_.1} parent=107 // pred_fallthru
          _
      $region108: #{_lambda_.1} parent=5 // pred_fallthru
        _
    $region6: #{_lambda_.1} parent=1 // loop_footer
      %s32 = sadd.s32 1, %s28
    $region7: #{_lambda_.1} parent=1 // loop_footer_branch
      %27 = sbr.rel target = $region3
    $region8: #{_lambda_.1} parent=1 // loop_exit
      _
    %1474 = vsyncpa [#allocation4], 1
    %s1475 = scalar_lea.sflag [#allocation4], 1
    %1476 = vsyncpa %s1475, 1

</llo_original>
